<compile_context>
chip_gen: v5e
topology: v5e:2x2
jax: 0.10.0
libtpu: 0.0.40
codegen_flags: <defaults>
</compile_context>

<pallas_src>
import functools

import jax
import jax.numpy as jnp
from jax.experimental import pallas as pl
from jax.experimental.pallas import tpu as pltpu

LANE = 128          # lane width — channels are kept padded to this
_NEG = -1e30        # maxpool spatial-padding value (finite, bf16-representable)


def _ru(n, m):
    return ((n + m - 1) // m) * m


def _pick_vmem_limit():
    """Generation-aware scoped-VMEM limit: ~3/4 of physical, capped at 96 MiB."""
    cap = 64 * 1024 * 1024
    try:
        info = pltpu.get_tpu_info()
        cap = int(getattr(info, "vmem_capacity_bytes", cap) or cap)
    except Exception:
        pass
    return int(min(cap * 3 // 4, 96 * 1024 * 1024))


_VMEM_LIMIT = _pick_vmem_limit()


# ----------------------------------------------------------------------------
# Kernel 1: tiled matmul with f32 accumulator + fused bias(+BN)(+ReLU)
# ----------------------------------------------------------------------------
def _mm_kernel(a_ref, b_ref, bias_ref, o_ref, acc_ref, *, relu):
    @pl.when(pl.program_id(2) == 0)
    def _():
        acc_ref[...] = jnp.zeros_like(acc_ref)

    acc_ref[...] += jnp.dot(a_ref[...], b_ref[...],
                            preferred_element_type=jnp.float32)

    @pl.when(pl.program_id(2) == pl.num_programs(2) - 1)
    def _():
        y = acc_ref[...] + bias_ref[...]
        if relu:
            y = jnp.maximum(y, 0.0)
        o_ref[...] = y.astype(o_ref.dtype)


def pallas_matmul(a, w_p, bias_p, relu=False, out_dtype=jnp.float32):
    """a: (M, K) activation; w_p: (Kp, Np) PRE-padded bf16 weight;
    bias_p: (1, Np) PRE-padded f32.  Returns relu?(a @ w + bias) as (M, Np)."""
    M, K = a.shape
    Kp, Np = w_p.shape
    assert K <= Kp and Kp % LANE == 0 and Np % LANE == 0

    tm = min(512, _ru(M, 16))                 # multiples of 16: bf16 sublane pack
    tn = min(512, Np)
    if Np % tn:
        tn = LANE
    tk = min(1024, Kp)
    if Kp % tk:
        tk = LANE
    # give v7x's two TensorCores >=2 blocks on a parallel axis when feasible
    if (_ru(M, tm) // tm) < 2 and (Np // tn) < 2 and M > 16:
        tm = max(16, _ru(-(-M // 2), 16))
    Mp = _ru(M, tm)

    a_p = a.astype(jnp.bfloat16)
    if (Mp, Kp) != (M, K):
        a_p = jnp.pad(a_p, ((0, Mp - M), (0, Kp - K)))

    out = pl.pallas_call(
        functools.partial(_mm_kernel, relu=relu),
        out_shape=jax.ShapeDtypeStruct((Mp, Np), out_dtype),
        grid=(Mp // tm, Np // tn, Kp // tk),
        in_specs=[
            pl.BlockSpec((tm, tk), lambda i, j, k: (i, k)),
            pl.BlockSpec((tk, tn), lambda i, j, k: (k, j)),
            pl.BlockSpec((1, tn), lambda i, j, k: (0, j)),
        ],
        out_specs=pl.BlockSpec((tm, tn), lambda i, j, k: (i, j)),
        scratch_shapes=[pltpu.VMEM((tm, tn), jnp.float32)],
        compiler_params=pltpu.CompilerParams(
            dimension_semantics=("parallel", "parallel", "arbitrary"),
            vmem_limit_bytes=_VMEM_LIMIT),
    )(a_p, w_p, bias_p)
    return out[:M] if Mp != M else out


# ----------------------------------------------------------------------------
# Kernel 2: fully fused PNAS cell
#   branch A: ReLU -> depthwise 3x3 -> 1x1 pointwise (BN folded)
#   branch B: maxpool 3x3/s1       -> 1x1 pointwise (BN folded)
#   combine : add + bias + ReLU
# One grid step processes one image from a single (H+2, W+2, Cp) padded block.
# TODO(synk): for large spatial sizes this should become a haloed row-tile grid
# instead of one whole image per step.
# ----------------------------------------------------------------------------
def _cell_kernel(x_ref, dw_ref, wa_ref, wb_ref, b_ref, o_ref, *, H, W):
    Cp = x_ref.shape[-1]
    x = x_ref[0].astype(jnp.float32)                       # (H+2, W+2, Cp)

    dw_acc = jnp.zeros((H, W, Cp), jnp.float32)
    mp_acc = jnp.full((H, W, Cp), _NEG, jnp.float32)
    for kh in range(3):                                    # static, unrolled
        for kw in range(3):
            tap = x[kh:kh + H, kw:kw + W, :]
            # depthwise conv over relu(x): spatial pad (-1e30) -> relu -> 0
            dw_acc = dw_acc + jnp.maximum(tap, 0.0) * dw_ref[kh * 3 + kw]
            mp_acc = jnp.maximum(mp_acc, tap)

    dw2 = dw_acc.reshape(H * W, Cp).astype(jnp.bfloat16)
    mp2 = mp_acc.reshape(H * W, Cp).astype(jnp.bfloat16)
    y = jnp.dot(dw2, wa_ref[...], preferred_element_type=jnp.float32)
    y = y + jnp.dot(mp2, wb_ref[...], preferred_element_type=jnp.float32)
    y = jnp.maximum(y + b_ref[...], 0.0)
    o_ref[0] = y.astype(o_ref.dtype)


def pnas_cell(x, cell):
    """x: (N, H, W, Cp) bf16, channel-padded.  Returns (N, H, W, Cp) bf16."""
    N, H, W, Cp = x.shape
    xp = jnp.pad(x, ((0, 0), (1, 1), (1, 1), (0, 0)),
                 constant_values=_NEG)                     # one spatial pad, no 9x taps

    out = pl.pallas_call(
        functools.partial(_cell_kernel, H=H, W=W),
        out_shape=jax.ShapeDtypeStruct((N, H * W, Cp), jnp.bfloat16),
        grid=(N,),
        in_specs=[
            pl.BlockSpec((1, H + 2, W + 2, Cp), lambda n: (n, 0, 0, 0)),
            pl.BlockSpec((9, 1, Cp), lambda n: (0, 0, 0)),
            pl.BlockSpec((Cp, Cp), lambda n: (0, 0)),
            pl.BlockSpec((Cp, Cp), lambda n: (0, 0)),
            pl.BlockSpec((1, Cp), lambda n: (0, 0)),
        ],
        out_specs=pl.BlockSpec((1, H * W, Cp), lambda n: (n, 0, 0)),
        compiler_params=pltpu.CompilerParams(
            dimension_semantics=("parallel",),
            vmem_limit_bytes=_VMEM_LIMIT),
    )(xp, cell["dw_w"], cell["wa"], cell["wb"], cell["b"])
    return out.reshape(N, H, W, Cp)


# ----------------------------------------------------------------------------
# Kernel 3: global average pool (head ReLU already applied by the last cell)
# ----------------------------------------------------------------------------
def _gap_kernel(x_ref, o_ref, acc_ref, *, inv_s):
    @pl.when(pl.program_id(0) == 0)
    def _():
        acc_ref[...] = jnp.zeros_like(acc_ref)

    acc_ref[...] += jnp.sum(x_ref[...].astype(jnp.float32), axis=1)

    @pl.when(pl.program_id(0) == pl.num_programs(0) - 1)
    def _():
        o_ref[...] = acc_ref[...] * inv_s


def pallas_gap(x):
    """x: (N, S, Cp) bf16 -> (N, Cp) f32 spatial mean."""
    N, S, Cp = x.shape
    ts = min(1024, _ru(S, 8))
    Sp = _ru(S, ts)
    if Sp != S:
        x = jnp.pad(x, ((0, 0), (0, Sp - S), (0, 0)))      # zero pad: sum unaffected
    return pl.pallas_call(
        functools.partial(_gap_kernel, inv_s=1.0 / float(S)),
        out_shape=jax.ShapeDtypeStruct((N, Cp), jnp.float32),
        grid=(Sp // ts,),
        in_specs=[pl.BlockSpec((N, ts, Cp), lambda s: (0, s, 0))],
        out_specs=pl.BlockSpec((N, Cp), lambda s: (0, 0)),
        scratch_shapes=[pltpu.VMEM((N, Cp), jnp.float32)],
        compiler_params=pltpu.CompilerParams(
            dimension_semantics=("arbitrary",),
            vmem_limit_bytes=_VMEM_LIMIT),
    )(x)


# ----------------------------------------------------------------------------
# JAX glue: stem im2col (tiny: Cin=3, K=27)
# TODO(synk): large convs should stream haloed tiles inside a kernel instead.
# ----------------------------------------------------------------------------
def _extract_patches(x, ksize, stride, padding):
    N, H, W, C = x.shape
    xp = jnp.pad(x, ((0, 0), (padding, padding), (padding, padding), (0, 0)))
    OH = (H + 2 * padding - ksize) // stride + 1
    OW = (W + 2 * padding - ksize) // stride + 1
    cols = [xp[:, kh:kh + stride * OH:stride, kw:kw + stride * OW:stride, :]
            for kh in range(ksize) for kw in range(ksize)]
    patches = jnp.concatenate(cols, axis=-1).reshape(N * OH * OW, ksize * ksize * C)
    return patches, (N, OH, OW)


# ----------------------------------------------------------------------------
# Model: parameters + forward
# ----------------------------------------------------------------------------
def init_params(key, in_ch, num_classes, stem_ch=16, c1=24, c2=32):
    ks = jax.random.split(key, 16)

    def nrm(k, shape, scale=0.1):
        return (scale * jax.random.normal(k, shape)).astype(jnp.float32)

    def bn(k, c):
        k1, k2 = jax.random.split(k)
        # folded inference BN: scale = gamma/sqrt(var+eps), bias = beta - mean*scale
        scale = (1.0 + 0.05 * jax.random.normal(k1, (c,))).astype(jnp.float32)
        bias = (0.05 * jax.random.normal(k2, (c,))).astype(jnp.float32)
        return scale, bias

    stem_bn_s, stem_bn_b = bn(ks[1], stem_ch)
    c0_pw_bn_s, c0_pw_bn_b = bn(ks[4], c1)
    c0_pool_bn_s, c0_pool_bn_b = bn(ks[6], c1)
    c1_pw_bn_s, c1_pw_bn_b = bn(ks[9], c2)
    c1_pool_bn_s, c1_pool_bn_b = bn(ks[11], c2)
    return {
        "stem_w": nrm(ks[0], (3, 3, in_ch, stem_ch)),
        "stem_bn_s": stem_bn_s, "stem_bn_b": stem_bn_b,
        "cell0": {
            "cin": stem_ch, "cout": c1,
            "dw_w": nrm(ks[2], (3, 3, stem_ch)),
            "pw_w": nrm(ks[3], (stem_ch, c1)),
            "pw_bn_s": c0_pw_bn_s, "pw_bn_b": c0_pw_bn_b,
            "pool_pw_w": nrm(ks[5], (stem_ch, c1)),
            "pool_bn_s": c0_pool_bn_s, "pool_bn_b": c0_pool_bn_b,
        },
        "cell1": {
            "cin": c1, "cout": c2,
            "dw_w": nrm(ks[7], (3, 3, c1)),
            "pw_w": nrm(ks[8], (c1, c2)),
            "pw_bn_s": c1_pw_bn_s, "pw_bn_b": c1_pw_bn_b,
            "pool_pw_w": nrm(ks[10], (c1, c2)),
            "pool_bn_s": c1_pool_bn_s, "pool_bn_b": c1_pool_bn_b,
        },
        "fc_w": nrm(ks[12], (c2, num_classes)),
        "fc_b": nrm(ks[13], (num_classes,)),
    }


def prepare_inference_params(p, cp=LANE):
    """One-time inference prep (outside the hot path): fold BN scales into
    conv/pointwise weights, pad all channel axes to the 128-lane width, and
    pre-cast matmul weights to bfloat16."""
    def pad_w_bf16(w, rows, cols):
        out = jnp.zeros((rows, cols), jnp.float32)
        return out.at[:w.shape[0], :w.shape[1]].set(w).astype(jnp.bfloat16)

    def pad_bias(b, cols):
        return jnp.zeros((1, cols), jnp.float32).at[0, :b.shape[0]].set(b)

    # stem: fold BN into the 3x3 conv weight, pad K 27->128 and Cout->128
    KH, KW, Cin, Cout = p["stem_w"].shape
    w = p["stem_w"].reshape(KH * KW * Cin, Cout) * p["stem_bn_s"][None, :]
    stem = {"w": pad_w_bf16(w, _ru(KH * KW * Cin, LANE), cp),
            "b": pad_bias(p["stem_bn_b"], cp)}

    def prep_cell(c):
        cin, cout = c["cin"], c["cout"]
        dw = jnp.zeros((9, 1, cp), jnp.float32).at[:, 0, :cin].set(
            c["dw_w"].reshape(9, cin))
        wa = pad_w_bf16(c["pw_w"] * c["pw_bn_s"][None, :], cp, cp)
        wb = pad_w_bf16(c["pool_pw_w"] * c["pool_bn_s"][None, :], cp, cp)
        b = pad_bias(c["pw_bn_b"] + c["pool_bn_b"], cp)
        return {"dw_w": dw, "wa": wa, "wb": wb, "b": b}

    c2, num_classes = p["fc_w"].shape
    return {
        "stem": stem,
        "cell0": prep_cell(p["cell0"]),
        "cell1": prep_cell(p["cell1"]),
        "fc_w": pad_w_bf16(p["fc_w"], cp, _ru(num_classes, LANE)),
        "fc_b": pad_bias(p["fc_b"], _ru(num_classes, LANE)),
    }


def pnasnet_forward(x_nchw, params, num_classes):
    # NCHW (PyTorch) -> NHWC (channels map to the 128-wide lane axis).
    x = jnp.transpose(x_nchw.astype(jnp.float32), (0, 2, 3, 1))
    # stem: conv_0 (3x3, stride 2, no bias) with BN folded into the weights.
    patches, (N, OH, OW) = _extract_patches(x, 3, 2, 1)
    x = pallas_matmul(patches, params["stem"]["w"], params["stem"]["b"],
                      relu=False, out_dtype=jnp.bfloat16).reshape(N, OH, OW, LANE)
    # abbreviated cell stack (see TODO(synk) at top of file).
    x = pnas_cell(x, params["cell0"])
    x = pnas_cell(x, params["cell1"])        # last cell epilogue already applies ReLU
    # head: global avg pool -> dropout(eval == identity) -> last_linear.
    N, H, W, Cp = x.shape
    feat = pallas_gap(x.reshape(N, H * W, Cp))                     # (N, Cp) f32
    logits = pallas_matmul(feat, params["fc_w"], params["fc_b"],
                           relu=False, out_dtype=jnp.float32)
    return logits[:, :num_classes]


# ----------------------------------------------------------------------------
if __name__ == "__main__":
    num_classes = 10
    in_ch = 3
    batch, spatial = 2, 16

    x = jax.random.normal(jax.random.PRNGKey(0),
                          (batch, in_ch, spatial, spatial), jnp.float32)

    raw_params = init_params(jax.random.PRNGKey(42), in_ch, num_classes)
    params = prepare_inference_params(raw_params)

    fwd = jax.jit(pnasnet_forward, static_argnums=(2,))
    out = jax.block_until_ready(fwd(x, params, num_classes))

    assert out.shape == (batch, num_classes), out.shape
    assert bool(jnp.all(jnp.isfinite(out)))
    print("KERNEL_OK")
</pallas_src>

<mosaic_0001>
module attributes {stable_mosaic.version = 11 : i64} {
  func.func @_mm_kernel(%arg0: i32, %arg1: i32, %arg2: i32, %arg3: memref<64x128xbf16, #tpu.memory_space<vmem>>, %arg4: memref<128x128xbf16, #tpu.memory_space<vmem>>, %arg5: memref<1x128xf32, #tpu.memory_space<vmem>>, %arg6: memref<64x128xbf16, #tpu.memory_space<vmem>>, %arg7: memref<64x128xf32, #tpu.memory_space<vmem>>) attributes {dimension_semantics = [#tpu.dimension_semantics<parallel>, #tpu.dimension_semantics<parallel>, #tpu.dimension_semantics<arbitrary>], iteration_bounds = array<i64: 2, 1, 1>, scalar_prefetch = 0 : i64, scratch_operands = 1 : i64, tpu.core_type = #tpu.core_type<tc>, window_params = [{transform_indices = @transform_0, window_bounds = array<i64: 64, 128>}, {transform_indices = @transform_1, window_bounds = array<i64: 128, 128>}, {transform_indices = @transform_2, window_bounds = array<i64: 1, 128>}, {transform_indices = @transform_3, window_bounds = array<i64: 64, 128>}]} {
    %c0_i32 = arith.constant 0 : i32
    %0 = arith.cmpi eq, %arg2, %c0_i32 : i32
    %1 = arith.extui %0 : i1 to i32
    %c0_i32_0 = arith.constant 0 : i32
    %2 = arith.cmpi ne, %1, %c0_i32_0 : i32
    scf.if %2 {
      %cst_10 = arith.constant 0.000000e+00 : f32
      %12 = vector.broadcast %cst_10 : f32 to vector<64x128xf32>
      %c0_11 = arith.constant 0 : index
      %c0_12 = arith.constant 0 : index
      %13 = vector.load %arg7[%c0_11, %c0_12] : memref<64x128xf32, #tpu.memory_space<vmem>>, vector<64x128xf32>
      tpu.vector_store %arg7[%c0_11, %c0_12], %12 {strides = array<i32>} : memref<64x128xf32, #tpu.memory_space<vmem>>, vector<64x128xf32>,
    } else {
    }
    %c0 = arith.constant 0 : index
    %c0_1 = arith.constant 0 : index
    %3 = vector.load %arg7[%c0, %c0_1] : memref<64x128xf32, #tpu.memory_space<vmem>>, vector<64x128xf32>
    %c0_2 = arith.constant 0 : index
    %c0_3 = arith.constant 0 : index
    %4 = vector.load %arg3[%c0_2, %c0_3] : memref<64x128xbf16, #tpu.memory_space<vmem>>, vector<64x128xbf16>
    %c0_4 = arith.constant 0 : index
    %c0_5 = arith.constant 0 : index
    %5 = vector.load %arg4[%c0_4, %c0_5] : memref<128x128xbf16, #tpu.memory_space<vmem>>, vector<128x128xbf16>
    %cst = arith.constant dense<0.000000e+00> : vector<64x128xf32>
    %6 = tpu.matmul %4, %5, %cst {dimension_numbers = #tpu.dot_dimension_numbers<[1], [0], [0], [1], [0, 0, 1, 1], [], []>} : vector<64x128xbf16>, vector<128x128xbf16>, vector<64x128xf32> -> vector<64x128xf32>
    %7 = arith.addf %3, %6 : vector<64x128xf32>
    %c0_6 = arith.constant 0 : index
    %c0_7 = arith.constant 0 : index
    %8 = vector.load %arg7[%c0_6, %c0_7] : memref<64x128xf32, #tpu.memory_space<vmem>>, vector<64x128xf32>
    tpu.vector_store %arg7[%c0_6, %c0_7], %7 {strides = array<i32>} : memref<64x128xf32, #tpu.memory_space<vmem>>, vector<64x128xf32>,
    %c0_i32_8 = arith.constant 0 : i32
    %9 = arith.cmpi eq, %arg2, %c0_i32_8 : i32
    %10 = arith.extui %9 : i1 to i32
    %c0_i32_9 = arith.constant 0 : i32
    %11 = arith.cmpi ne, %10, %c0_i32_9 : i32
    scf.if %11 {
      %c0_10 = arith.constant 0 : index
      %c0_11 = arith.constant 0 : index
      %12 = vector.load %arg7[%c0_10, %c0_11] : memref<64x128xf32, #tpu.memory_space<vmem>>, vector<64x128xf32>
      %c0_12 = arith.constant 0 : index
      %c0_13 = arith.constant 0 : index
      %13 = vector.load %arg5[%c0_12, %c0_13] : memref<1x128xf32, #tpu.memory_space<vmem>>, vector<1x128xf32>
      %14 = vector.broadcast %13 : vector<1x128xf32> to vector<64x128xf32>
      %15 = arith.addf %12, %14 : vector<64x128xf32>
      %16 = arith.truncf %15 : vector<64x128xf32> to vector<64x128xbf16>
      %c0_14 = arith.constant 0 : index
      %c0_15 = arith.constant 0 : index
      %17 = vector.load %arg6[%c0_14, %c0_15] : memref<64x128xbf16, #tpu.memory_space<vmem>>, vector<64x128xbf16>
      tpu.vector_store %arg6[%c0_14, %c0_15], %16 {strides = array<i32>} : memref<64x128xbf16, #tpu.memory_space<vmem>>, vector<64x128xbf16>,
    } else {
    }
    return
  }
  func.func @transform_0(%arg0: i32, %arg1: i32, %arg2: i32) -> (i32, i32) {
    %c0_i32 = arith.constant 0 : i32
    return %arg0, %arg2 : i32, i32
  }
  func.func @transform_1(%arg0: i32, %arg1: i32, %arg2: i32) -> (i32, i32) {
    %c0_i32 = arith.constant 0 : i32
    return %arg2, %arg1 : i32, i32
  }
  func.func @transform_2(%arg0: i32, %arg1: i32, %arg2: i32) -> (i32, i32) {
    %c0_i32 = arith.constant 0 : i32
    %c0_i32_0 = arith.constant 0 : i32
    return %c0_i32, %arg1 : i32, i32
  }
  func.func @transform_3(%arg0: i32, %arg1: i32, %arg2: i32) -> (i32, i32) {
    %c0_i32 = arith.constant 0 : i32
    return %arg0, %arg1 : i32, i32
  }
}

module attributes {stable_mosaic.version = 11 : i64} {
  func.func @_cell_kernel(%arg0: i32, %arg1: memref<1x10x10x128xbf16, #tpu.memory_space<vmem>>, %arg2: memref<9x1x128xf32, #tpu.memory_space<vmem>>, %arg3: memref<128x128xbf16, #tpu.memory_space<vmem>>, %arg4: memref<128x128xbf16, #tpu.memory_space<vmem>>, %arg5: memref<1x128xf32, #tpu.memory_space<vmem>>, %arg6: memref<1x64x128xbf16, #tpu.memory_space<vmem>>) attributes {dimension_semantics = [#tpu.dimension_semantics<parallel>], iteration_bounds = array<i64: 2>, scalar_prefetch = 0 : i64, scratch_operands = 0 : i64, tpu.core_type = #tpu.core_type<tc>, window_params = [{transform_indices = @transform_0, window_bounds = array<i64: 1, 10, 10, 128>}, {pipeline_mode = #tpu.pipeline_mode<synchronous>, transform_indices = @transform_1, window_bounds = array<i64: 9, 1, 128>}, {pipeline_mode = #tpu.pipeline_mode<synchronous>, transform_indices = @transform_2, window_bounds = array<i64: 128, 128>}, {pipeline_mode = #tpu.pipeline_mode<synchronous>, transform_indices = @transform_3, window_bounds = array<i64: 128, 128>}, {pipeline_mode = #tpu.pipeline_mode<synchronous>, transform_indices = @transform_4, window_bounds = array<i64: 1, 128>}, {transform_indices = @transform_5, window_bounds = array<i64: 1, 64, 128>}]} {
    %c0 = arith.constant 0 : index
    %c0_0 = arith.constant 0 : index
    %c0_1 = arith.constant 0 : index
    %c0_2 = arith.constant 0 : index
    %0 = vector.load %arg1[%c0, %c0_0, %c0_1, %c0_2] : memref<1x10x10x128xbf16, #tpu.memory_space<vmem>>, vector<1x10x10x128xbf16>
    %1 = vector.shape_cast %0 : vector<1x10x10x128xbf16> to vector<10x10x128xbf16>
    %2 = arith.extf %1 : vector<10x10x128xbf16> to vector<10x10x128xf32>
    %cst = arith.constant 0.000000e+00 : f32
    %3 = vector.broadcast %cst : f32 to vector<8x8x128xf32>
    %cst_3 = arith.constant -1.000000e+30 : f32
    %4 = vector.broadcast %cst_3 : f32 to vector<8x8x128xf32>
    %5 = vector.extract_strided_slice %2 {offsets = [0, 0, 0], sizes = [8, 8, 128], strides = [1, 1, 1]} : vector<10x10x128xf32> to vector<8x8x128xf32>
    %cst_4 = arith.constant 0.000000e+00 : f32
    %6 = vector.broadcast %cst_4 : f32 to vector<8x8x128xf32>
    %7 = arith.maximumf %5, %6 : vector<8x8x128xf32>
    %c0_5 = arith.constant 0 : index
    %c0_6 = arith.constant 0 : index
    %c0_7 = arith.constant 0 : index
    %8 = vector.load %arg2[%c0_5, %c0_6, %c0_7] : memref<9x1x128xf32, #tpu.memory_space<vmem>>, vector<1x1x128xf32>
    %9 = vector.shape_cast %8 : vector<1x1x128xf32> to vector<1x128xf32>
    %10 = vector.shape_cast %9 : vector<1x128xf32> to vector<1x1x128xf32>
    %11 = vector.broadcast %10 : vector<1x1x128xf32> to vector<8x8x128xf32>
    %12 = arith.mulf %7, %11 : vector<8x8x128xf32>
    %13 = arith.addf %3, %12 : vector<8x8x128xf32>
    %14 = arith.maximumf %4, %5 : vector<8x8x128xf32>
    %15 = vector.extract_strided_slice %2 {offsets = [0, 1, 0], sizes = [8, 8, 128], strides = [1, 1, 1]} : vector<10x10x128xf32> to vector<8x8x128xf32>
    %cst_8 = arith.constant 0.000000e+00 : f32
    %16 = vector.broadcast %cst_8 : f32 to vector<8x8x128xf32>
    %17 = arith.maximumf %15, %16 : vector<8x8x128xf32>
    %c1 = arith.constant 1 : index
    %c0_9 = arith.constant 0 : index
    %c0_10 = arith.constant 0 : index
    %18 = vector.load %arg2[%c1, %c0_9, %c0_10] : memref<9x1x128xf32, #tpu.memory_space<vmem>>, vector<1x1x128xf32>
    %19 = vector.shape_cast %18 : vector<1x1x128xf32> to vector<1x128xf32>
    %20 = vector.shape_cast %19 : vector<1x128xf32> to vector<1x1x128xf32>
    %21 = vector.broadcast %20 : vector<1x1x128xf32> to vector<8x8x128xf32>
    %22 = arith.mulf %17, %21 : vector<8x8x128xf32>
    %23 = arith.addf %13, %22 : vector<8x8x128xf32>
    %24 = arith.maximumf %14, %15 : vector<8x8x128xf32>
    %25 = vector.extract_strided_slice %2 {offsets = [0, 2, 0], sizes = [8, 8, 128], strides = [1, 1, 1]} : vector<10x10x128xf32> to vector<8x8x128xf32>
    %cst_11 = arith.constant 0.000000e+00 : f32
    %26 = vector.broadcast %cst_11 : f32 to vector<8x8x128xf32>
    %27 = arith.maximumf %25, %26 : vector<8x8x128xf32>
    %c2 = arith.constant 2 : index
    %c0_12 = arith.constant 0 : index
    %c0_13 = arith.constant 0 : index
    %28 = vector.load %arg2[%c2, %c0_12, %c0_13] : memref<9x1x128xf32, #tpu.memory_space<vmem>>, vector<1x1x128xf32>
    %29 = vector.shape_cast %28 : vector<1x1x128xf32> to vector<1x128xf32>
    %30 = vector.shape_cast %29 : vector<1x128xf32> to vector<1x1x128xf32>
    %31 = vector.broadcast %30 : vector<1x1x128xf32> to vector<8x8x128xf32>
    %32 = arith.mulf %27, %31 : vector<8x8x128xf32>
    %33 = arith.addf %23, %32 : vector<8x8x128xf32>
    %34 = arith.maximumf %24, %25 : vector<8x8x128xf32>
    %35 = vector.extract_strided_slice %2 {offsets = [1, 0, 0], sizes = [8, 8, 128], strides = [1, 1, 1]} : vector<10x10x128xf32> to vector<8x8x128xf32>
    %cst_14 = arith.constant 0.000000e+00 : f32
    %36 = vector.broadcast %cst_14 : f32 to vector<8x8x128xf32>
    %37 = arith.maximumf %35, %36 : vector<8x8x128xf32>
    %c3 = arith.constant 3 : index
    %c0_15 = arith.constant 0 : index
    %c0_16 = arith.constant 0 : index
    %38 = vector.load %arg2[%c3, %c0_15, %c0_16] : memref<9x1x128xf32, #tpu.memory_space<vmem>>, vector<1x1x128xf32>
    %39 = vector.shape_cast %38 : vector<1x1x128xf32> to vector<1x128xf32>
    %40 = vector.shape_cast %39 : vector<1x128xf32> to vector<1x1x128xf32>
    %41 = vector.broadcast %40 : vector<1x1x128xf32> to vector<8x8x128xf32>
    %42 = arith.mulf %37, %41 : vector<8x8x128xf32>
    %43 = arith.addf %33, %42 : vector<8x8x128xf32>
    %44 = arith.maximumf %34, %35 : vector<8x8x128xf32>
    %45 = vector.extract_strided_slice %2 {offsets = [1, 1, 0], sizes = [8, 8, 128], strides = [1, 1, 1]} : vector<10x10x128xf32> to vector<8x8x128xf32>
    %cst_17 = arith.constant 0.000000e+00 : f32
    %46 = vector.broadcast %cst_17 : f32 to vector<8x8x128xf32>
    %47 = arith.maximumf %45, %46 : vector<8x8x128xf32>
    %c4 = arith.constant 4 : index
    %c0_18 = arith.constant 0 : index
    %c0_19 = arith.constant 0 : index
    %48 = vector.load %arg2[%c4, %c0_18, %c0_19] : memref<9x1x128xf32, #tpu.memory_space<vmem>>, vector<1x1x128xf32>
    %49 = vector.shape_cast %48 : vector<1x1x128xf32> to vector<1x128xf32>
    %50 = vector.shape_cast %49 : vector<1x128xf32> to vector<1x1x128xf32>
    %51 = vector.broadcast %50 : vector<1x1x128xf32> to vector<8x8x128xf32>
    %52 = arith.mulf %47, %51 : vector<8x8x128xf32>
    %53 = arith.addf %43, %52 : vector<8x8x128xf32>
    %54 = arith.maximumf %44, %45 : vector<8x8x128xf32>
    %55 = vector.extract_strided_slice %2 {offsets = [1, 2, 0], sizes = [8, 8, 128], strides = [1, 1, 1]} : vector<10x10x128xf32> to vector<8x8x128xf32>
    %cst_20 = arith.constant 0.000000e+00 : f32
    %56 = vector.broadcast %cst_20 : f32 to vector<8x8x128xf32>
    %57 = arith.maximumf %55, %56 : vector<8x8x128xf32>
    %c5 = arith.constant 5 : index
    %c0_21 = arith.constant 0 : index
    %c0_22 = arith.constant 0 : index
    %58 = vector.load %arg2[%c5, %c0_21, %c0_22] : memref<9x1x128xf32, #tpu.memory_space<vmem>>, vector<1x1x128xf32>
    %59 = vector.shape_cast %58 : vector<1x1x128xf32> to vector<1x128xf32>
    %60 = vector.shape_cast %59 : vector<1x128xf32> to vector<1x1x128xf32>
    %61 = vector.broadcast %60 : vector<1x1x128xf32> to vector<8x8x128xf32>
    %62 = arith.mulf %57, %61 : vector<8x8x128xf32>
    %63 = arith.addf %53, %62 : vector<8x8x128xf32>
    %64 = arith.maximumf %54, %55 : vector<8x8x128xf32>
    %65 = vector.extract_strided_slice %2 {offsets = [2, 0, 0], sizes = [8, 8, 128], strides = [1, 1, 1]} : vector<10x10x128xf32> to vector<8x8x128xf32>
    %cst_23 = arith.constant 0.000000e+00 : f32
    %66 = vector.broadcast %cst_23 : f32 to vector<8x8x128xf32>
    %67 = arith.maximumf %65, %66 : vector<8x8x128xf32>
    %c6 = arith.constant 6 : index
    %c0_24 = arith.constant 0 : index
    %c0_25 = arith.constant 0 : index
    %68 = vector.load %arg2[%c6, %c0_24, %c0_25] : memref<9x1x128xf32, #tpu.memory_space<vmem>>, vector<1x1x128xf32>
    %69 = vector.shape_cast %68 : vector<1x1x128xf32> to vector<1x128xf32>
    %70 = vector.shape_cast %69 : vector<1x128xf32> to vector<1x1x128xf32>
    %71 = vector.broadcast %70 : vector<1x1x128xf32> to vector<8x8x128xf32>
    %72 = arith.mulf %67, %71 : vector<8x8x128xf32>
    %73 = arith.addf %63, %72 : vector<8x8x128xf32>
    %74 = arith.maximumf %64, %65 : vector<8x8x128xf32>
    %75 = vector.extract_strided_slice %2 {offsets = [2, 1, 0], sizes = [8, 8, 128], strides = [1, 1, 1]} : vector<10x10x128xf32> to vector<8x8x128xf32>
    %cst_26 = arith.constant 0.000000e+00 : f32
    %76 = vector.broadcast %cst_26 : f32 to vector<8x8x128xf32>
    %77 = arith.maximumf %75, %76 : vector<8x8x128xf32>
    %c7 = arith.constant 7 : index
    %c0_27 = arith.constant 0 : index
    %c0_28 = arith.constant 0 : index
    %78 = vector.load %arg2[%c7, %c0_27, %c0_28] : memref<9x1x128xf32, #tpu.memory_space<vmem>>, vector<1x1x128xf32>
    %79 = vector.shape_cast %78 : vector<1x1x128xf32> to vector<1x128xf32>
    %80 = vector.shape_cast %79 : vector<1x128xf32> to vector<1x1x128xf32>
    %81 = vector.broadcast %80 : vector<1x1x128xf32> to vector<8x8x128xf32>
    %82 = arith.mulf %77, %81 : vector<8x8x128xf32>
    %83 = arith.addf %73, %82 : vector<8x8x128xf32>
    %84 = arith.maximumf %74, %75 : vector<8x8x128xf32>
    %85 = vector.extract_strided_slice %2 {offsets = [2, 2, 0], sizes = [8, 8, 128], strides = [1, 1, 1]} : vector<10x10x128xf32> to vector<8x8x128xf32>
    %cst_29 = arith.constant 0.000000e+00 : f32
    %86 = vector.broadcast %cst_29 : f32 to vector<8x8x128xf32>
    %87 = arith.maximumf %85, %86 : vector<8x8x128xf32>
    %c8 = arith.constant 8 : index
    %c0_30 = arith.constant 0 : index
    %c0_31 = arith.constant 0 : index
    %88 = vector.load %arg2[%c8, %c0_30, %c0_31] : memref<9x1x128xf32, #tpu.memory_space<vmem>>, vector<1x1x128xf32>
    %89 = vector.shape_cast %88 : vector<1x1x128xf32> to vector<1x128xf32>
    %90 = vector.shape_cast %89 : vector<1x128xf32> to vector<1x1x128xf32>
    %91 = vector.broadcast %90 : vector<1x1x128xf32> to vector<8x8x128xf32>
    %92 = arith.mulf %87, %91 : vector<8x8x128xf32>
    %93 = arith.addf %83, %92 : vector<8x8x128xf32>
    %94 = arith.maximumf %84, %85 : vector<8x8x128xf32>
    %95 = vector.shape_cast %93 : vector<8x8x128xf32> to vector<64x128xf32>
    %96 = arith.truncf %95 : vector<64x128xf32> to vector<64x128xbf16>
    %97 = vector.shape_cast %94 : vector<8x8x128xf32> to vector<64x128xf32>
    %98 = arith.truncf %97 : vector<64x128xf32> to vector<64x128xbf16>
    %c0_32 = arith.constant 0 : index
    %c0_33 = arith.constant 0 : index
    %99 = vector.load %arg3[%c0_32, %c0_33] : memref<128x128xbf16, #tpu.memory_space<vmem>>, vector<128x128xbf16>
    %cst_34 = arith.constant dense<0.000000e+00> : vector<64x128xf32>
    %100 = tpu.matmul %96, %99, %cst_34 {dimension_numbers = #tpu.dot_dimension_numbers<[1], [0], [0], [1], [0, 0, 1, 1], [], []>} : vector<64x128xbf16>, vector<128x128xbf16>, vector<64x128xf32> -> vector<64x128xf32>
    %c0_35 = arith.constant 0 : index
    %c0_36 = arith.constant 0 : index
    %101 = vector.load %arg4[%c0_35, %c0_36] : memref<128x128xbf16, #tpu.memory_space<vmem>>, vector<128x128xbf16>
    %cst_37 = arith.constant dense<0.000000e+00> : vector<64x128xf32>
    %102 = tpu.matmul %98, %101, %cst_37 {dimension_numbers = #tpu.dot_dimension_numbers<[1], [0], [0], [1], [0, 0, 1, 1], [], []>} : vector<64x128xbf16>, vector<128x128xbf16>, vector<64x128xf32> -> vector<64x128xf32>
    %103 = arith.addf %100, %102 : vector<64x128xf32>
    %c0_38 = arith.constant 0 : index
    %c0_39 = arith.constant 0 : index
    %104 = vector.load %arg5[%c0_38, %c0_39] : memref<1x128xf32, #tpu.memory_space<vmem>>, vector<1x128xf32>
    %105 = vector.broadcast %104 : vector<1x128xf32> to vector<64x128xf32>
    %106 = arith.addf %103, %105 : vector<64x128xf32>
    %cst_40 = arith.constant 0.000000e+00 : f32
    %107 = vector.broadcast %cst_40 : f32 to vector<64x128xf32>
    %108 = arith.maximumf %106, %107 : vector<64x128xf32>
    %109 = arith.truncf %108 : vector<64x128xf32> to vector<64x128xbf16>
    %c0_41 = arith.constant 0 : index
    %c0_42 = arith.constant 0 : index
    %c0_43 = arith.constant 0 : index
    %110 = vector.load %arg6[%c0_41, %c0_42, %c0_43] : memref<1x64x128xbf16, #tpu.memory_space<vmem>>, vector<1x64x128xbf16>
    %111 = vector.shape_cast %110 : vector<1x64x128xbf16> to vector<64x128xbf16>
    %112 = vector.shape_cast %109 : vector<64x128xbf16> to vector<1x64x128xbf16>
    tpu.vector_store %arg6[%c0_41, %c0_42, %c0_43], %112 {strides = array<i32>} : memref<1x64x128xbf16, #tpu.memory_space<vmem>>, vector<1x64x128xbf16>,
    return
  }
  func.func @transform_0(%arg0: i32) -> (i32, i32, i32, i32) {
    %c0_i32 = arith.constant 0 : i32
    %c0_i32_0 = arith.constant 0 : i32
    %c0_i32_1 = arith.constant 0 : i32
    %c0_i32_2 = arith.constant 0 : i32
    return %arg0, %c0_i32, %c0_i32_0, %c0_i32_1 : i32, i32, i32, i32
  }
  func.func @transform_1(%arg0: i32) -> (i32, i32, i32) {
    %c0_i32 = arith.constant 0 : i32
    %c0_i32_0 = arith.constant 0 : i32
    %c0_i32_1 = arith.constant 0 : i32
    %c0_i32_2 = arith.constant 0 : i32
    return %c0_i32, %c0_i32_0, %c0_i32_1 : i32, i32, i32
  }
  func.func @transform_2(%arg0: i32) -> (i32, i32) {
    %c0_i32 = arith.constant 0 : i32
    %c0_i32_0 = arith.constant 0 : i32
    %c0_i32_1 = arith.constant 0 : i32
    return %c0_i32, %c0_i32_0 : i32, i32
  }
  func.func @transform_3(%arg0: i32) -> (i32, i32) {
    %c0_i32 = arith.constant 0 : i32
    %c0_i32_0 = arith.constant 0 : i32
    %c0_i32_1 = arith.constant 0 : i32
    return %c0_i32, %c0_i32_0 : i32, i32
  }
  func.func @transform_4(%arg0: i32) -> (i32, i32) {
    %c0_i32 = arith.constant 0 : i32
    %c0_i32_0 = arith.constant 0 : i32
    %c0_i32_1 = arith.constant 0 : i32
    return %c0_i32, %c0_i32_0 : i32, i32
  }
  func.func @transform_5(%arg0: i32) -> (i32, i32, i32) {
    %c0_i32 = arith.constant 0 : i32
    %c0_i32_0 = arith.constant 0 : i32
    %c0_i32_1 = arith.constant 0 : i32
    return %arg0, %c0_i32, %c0_i32_0 : i32, i32, i32
  }
}

module attributes {stable_mosaic.version = 11 : i64} {
  func.func @_gap_kernel(%arg0: i32, %arg1: memref<2x64x128xbf16, #tpu.memory_space<vmem>>, %arg2: memref<2x128xf32, #tpu.memory_space<vmem>>, %arg3: memref<2x128xf32, #tpu.memory_space<vmem>>) attributes {dimension_semantics = [#tpu.dimension_semantics<arbitrary>], iteration_bounds = array<i64: 1>, scalar_prefetch = 0 : i64, scratch_operands = 1 : i64, tpu.core_type = #tpu.core_type<tc>, window_params = [{transform_indices = @transform_0, window_bounds = array<i64: 2, 64, 128>}, {pipeline_mode = #tpu.pipeline_mode<synchronous>, transform_indices = @transform_1, window_bounds = array<i64: 2, 128>}]} {
    %c0_i32 = arith.constant 0 : i32
    %0 = arith.cmpi eq, %arg0, %c0_i32 : i32
    %1 = arith.extui %0 : i1 to i32
    %c0_i32_0 = arith.constant 0 : i32
    %2 = arith.cmpi ne, %1, %c0_i32_0 : i32
    scf.if %2 {
      %cst_9 = arith.constant 0.000000e+00 : f32
      %12 = vector.broadcast %cst_9 : f32 to vector<2x128xf32>
      %c0_10 = arith.constant 0 : index
      %c0_11 = arith.constant 0 : index
      %13 = vector.load %arg3[%c0_10, %c0_11] : memref<2x128xf32, #tpu.memory_space<vmem>>, vector<2x128xf32>
      tpu.vector_store %arg3[%c0_10, %c0_11], %12 {strides = array<i32>} : memref<2x128xf32, #tpu.memory_space<vmem>>, vector<2x128xf32>,
    } else {
    }
    %c0 = arith.constant 0 : index
    %c0_1 = arith.constant 0 : index
    %3 = vector.load %arg3[%c0, %c0_1] : memref<2x128xf32, #tpu.memory_space<vmem>>, vector<2x128xf32>
    %c0_2 = arith.constant 0 : index
    %c0_3 = arith.constant 0 : index
    %c0_4 = arith.constant 0 : index
    %4 = vector.load %arg1[%c0_2, %c0_3, %c0_4] : memref<2x64x128xbf16, #tpu.memory_space<vmem>>, vector<2x64x128xbf16>
    %5 = arith.extf %4 : vector<2x64x128xbf16> to vector<2x64x128xf32>
    %cst = arith.constant dense<0.000000e+00> : vector<2x128xf32>
    %6 = vector.multi_reduction <add>, %5, %cst [1] : vector<2x64x128xf32> to vector<2x128xf32>
    %7 = arith.addf %3, %6 : vector<2x128xf32>
    %c0_5 = arith.constant 0 : index
    %c0_6 = arith.constant 0 : index
    %8 = vector.load %arg3[%c0_5, %c0_6] : memref<2x128xf32, #tpu.memory_space<vmem>>, vector<2x128xf32>
    tpu.vector_store %arg3[%c0_5, %c0_6], %7 {strides = array<i32>} : memref<2x128xf32, #tpu.memory_space<vmem>>, vector<2x128xf32>,
    %c0_i32_7 = arith.constant 0 : i32
    %9 = arith.cmpi eq, %arg0, %c0_i32_7 : i32
    %10 = arith.extui %9 : i1 to i32
    %c0_i32_8 = arith.constant 0 : i32
    %11 = arith.cmpi ne, %10, %c0_i32_8 : i32
    scf.if %11 {
      %c0_9 = arith.constant 0 : index
      %c0_10 = arith.constant 0 : index
      %12 = vector.load %arg3[%c0_9, %c0_10] : memref<2x128xf32, #tpu.memory_space<vmem>>, vector<2x128xf32>
      %cst_11 = arith.constant 1.562500e-02 : f32
      %13 = vector.broadcast %cst_11 : f32 to vector<2x128xf32>
      %14 = arith.mulf %12, %13 : vector<2x128xf32>
      %c0_12 = arith.constant 0 : index
      %c0_13 = arith.constant 0 : index
      %15 = vector.load %arg2[%c0_12, %c0_13] : memref<2x128xf32, #tpu.memory_space<vmem>>, vector<2x128xf32>
      tpu.vector_store %arg2[%c0_12, %c0_13], %14 {strides = array<i32>} : memref<2x128xf32, #tpu.memory_space<vmem>>, vector<2x128xf32>,
    } else {
    }
    return
  }
  func.func @transform_0(%arg0: i32) -> (i32, i32, i32) {
    %c0_i32 = arith.constant 0 : i32
    %c0_i32_0 = arith.constant 0 : i32
    %c0_i32_1 = arith.constant 0 : i32
    return %c0_i32, %arg0, %c0_i32_0 : i32, i32, i32
  }
  func.func @transform_1(%arg0: i32) -> (i32, i32) {
    %c0_i32 = arith.constant 0 : i32
    %c0_i32_0 = arith.constant 0 : i32
    %c0_i32_1 = arith.constant 0 : i32
    return %c0_i32, %c0_i32_0 : i32, i32
  }
}

module attributes {stable_mosaic.version = 11 : i64} {
  func.func @_mm_kernel(%arg0: i32, %arg1: i32, %arg2: i32, %arg3: memref<16x128xbf16, #tpu.memory_space<vmem>>, %arg4: memref<128x128xbf16, #tpu.memory_space<vmem>>, %arg5: memref<1x128xf32, #tpu.memory_space<vmem>>, %arg6: memref<16x128xf32, #tpu.memory_space<vmem>>, %arg7: memref<16x128xf32, #tpu.memory_space<vmem>>) attributes {dimension_semantics = [#tpu.dimension_semantics<parallel>, #tpu.dimension_semantics<parallel>, #tpu.dimension_semantics<arbitrary>], iteration_bounds = array<i64: 1, 1, 1>, scalar_prefetch = 0 : i64, scratch_operands = 1 : i64, tpu.core_type = #tpu.core_type<tc>, window_params = [{transform_indices = @transform_0, window_bounds = array<i64: 16, 128>}, {transform_indices = @transform_1, window_bounds = array<i64: 128, 128>}, {transform_indices = @transform_2, window_bounds = array<i64: 1, 128>}, {transform_indices = @transform_3, window_bounds = array<i64: 16, 128>}]} {
    %c0_i32 = arith.constant 0 : i32
    %0 = arith.cmpi eq, %arg2, %c0_i32 : i32
    %1 = arith.extui %0 : i1 to i32
    %c0_i32_0 = arith.constant 0 : i32
    %2 = arith.cmpi ne, %1, %c0_i32_0 : i32
    scf.if %2 {
      %cst_10 = arith.constant 0.000000e+00 : f32
      %12 = vector.broadcast %cst_10 : f32 to vector<16x128xf32>
      %c0_11 = arith.constant 0 : index
      %c0_12 = arith.constant 0 : index
      %13 = vector.load %arg7[%c0_11, %c0_12] : memref<16x128xf32, #tpu.memory_space<vmem>>, vector<16x128xf32>
      tpu.vector_store %arg7[%c0_11, %c0_12], %12 {strides = array<i32>} : memref<16x128xf32, #tpu.memory_space<vmem>>, vector<16x128xf32>,
    } else {
    }
    %c0 = arith.constant 0 : index
    %c0_1 = arith.constant 0 : index
    %3 = vector.load %arg7[%c0, %c0_1] : memref<16x128xf32, #tpu.memory_space<vmem>>, vector<16x128xf32>
    %c0_2 = arith.constant 0 : index
    %c0_3 = arith.constant 0 : index
    %4 = vector.load %arg3[%c0_2, %c0_3] : memref<16x128xbf16, #tpu.memory_space<vmem>>, vector<16x128xbf16>
    %c0_4 = arith.constant 0 : index
    %c0_5 = arith.constant 0 : index
    %5 = vector.load %arg4[%c0_4, %c0_5] : memref<128x128xbf16, #tpu.memory_space<vmem>>, vector<128x128xbf16>
    %cst = arith.constant dense<0.000000e+00> : vector<16x128xf32>
    %6 = tpu.matmul %4, %5, %cst {dimension_numbers = #tpu.dot_dimension_numbers<[1], [0], [0], [1], [0, 0, 1, 1], [], []>} : vector<16x128xbf16>, vector<128x128xbf16>, vector<16x128xf32> -> vector<16x128xf32>
    %7 = arith.addf %3, %6 : vector<16x128xf32>
    %c0_6 = arith.constant 0 : index
    %c0_7 = arith.constant 0 : index
    %8 = vector.load %arg7[%c0_6, %c0_7] : memref<16x128xf32, #tpu.memory_space<vmem>>, vector<16x128xf32>
    tpu.vector_store %arg7[%c0_6, %c0_7], %7 {strides = array<i32>} : memref<16x128xf32, #tpu.memory_space<vmem>>, vector<16x128xf32>,
    %c0_i32_8 = arith.constant 0 : i32
    %9 = arith.cmpi eq, %arg2, %c0_i32_8 : i32
    %10 = arith.extui %9 : i1 to i32
    %c0_i32_9 = arith.constant 0 : i32
    %11 = arith.cmpi ne, %10, %c0_i32_9 : i32
    scf.if %11 {
      %c0_10 = arith.constant 0 : index
      %c0_11 = arith.constant 0 : index
      %12 = vector.load %arg7[%c0_10, %c0_11] : memref<16x128xf32, #tpu.memory_space<vmem>>, vector<16x128xf32>
      %c0_12 = arith.constant 0 : index
      %c0_13 = arith.constant 0 : index
      %13 = vector.load %arg5[%c0_12, %c0_13] : memref<1x128xf32, #tpu.memory_space<vmem>>, vector<1x128xf32>
      %14 = vector.broadcast %13 : vector<1x128xf32> to vector<16x128xf32>
      %15 = arith.addf %12, %14 : vector<16x128xf32>
      %c0_14 = arith.constant 0 : index
      %c0_15 = arith.constant 0 : index
      %16 = vector.load %arg6[%c0_14, %c0_15] : memref<16x128xf32, #tpu.memory_space<vmem>>, vector<16x128xf32>
      tpu.vector_store %arg6[%c0_14, %c0_15], %15 {strides = array<i32>} : memref<16x128xf32, #tpu.memory_space<vmem>>, vector<16x128xf32>,
    } else {
    }
    return
  }
  func.func @transform_0(%arg0: i32, %arg1: i32, %arg2: i32) -> (i32, i32) {
    %c0_i32 = arith.constant 0 : i32
    return %arg0, %arg2 : i32, i32
  }
  func.func @transform_1(%arg0: i32, %arg1: i32, %arg2: i32) -> (i32, i32) {
    %c0_i32 = arith.constant 0 : i32
    return %arg2, %arg1 : i32, i32
  }
  func.func @transform_2(%arg0: i32, %arg1: i32, %arg2: i32) -> (i32, i32) {
    %c0_i32 = arith.constant 0 : i32
    %c0_i32_0 = arith.constant 0 : i32
    return %c0_i32, %arg1 : i32, i32
  }
  func.func @transform_3(%arg0: i32, %arg1: i32, %arg2: i32) -> (i32, i32) {
    %c0_i32 = arith.constant 0 : i32
    return %arg0, %arg1 : i32, i32
  }
}

</mosaic_0001>

<llo_original>
// kernel: pnasnet_forward.5
$region0: #{pnasnet_forward.5}
  #allocation0 [shape = 'u32[]', space=smem, size = 0x4, offset = 0x4, fixed_abs, tag = 'smem constant byte address 0x4 - core index']
  #allocation1 [shape = 'u32[72,128]{1,0:T(1,128)}', space=vmem, size = 0x9000, scoped, tag = 'internal scratch']
  #allocation2 [shape = 'f32[64,128]{1,0:T(8,128)}', space=vmem, size = 0x8000, scoped, tag = 'scratch operand']
  %s0 = inlined_call_operand.vmem [shape: bf16[128,128], index: 0, kind: input, shape index: {}]
  %s1 = inlined_call_operand.vmem [shape: bf16[128,128], index: 1, kind: input, shape index: {}]
  %s2 = inlined_call_operand.vmem [shape: f32[1,128], index: 2, kind: input, shape index: {}]
  %s3 = inlined_call_operand.vmem [shape: bf16[128,128], index: 3, kind: output, shape index: {}]
  %s4 = sld [smem:[#allocation0]]
  $region53: #{pnasnet_forward.5} parent=0
    _
  %s6 = ssub.s32 1, %s4
  %s7 = scalar_select 0, %s6, %s4
  loop: start=0, step=1, limit=4
  $region2: #{pnasnet_forward.5} parent=0 // loop_pre_header
    _
  $region3: #{pnasnet_forward.5} parent=0 // loop_header
    %s9 = sphi 0, %s13
    %p10 = scmp.ge.s32.totalorder %s9, 4
    %s16 = sphi 0, %s35
    %s17 = sphi 0, %s31
    %s18 = sphi 0, %s27
    %s19 = sphi 0, %s16
    %s20 = sphi 0, %s17
    %s21 = sphi 0, %s18
    %s22 = sphi 0, %s19
    %s23 = sphi 0, %s20
    %s24 = sphi 0, %s21
    %s40 = sphi 0, %s42
    %s43 = sphi 0, %s40
    %s44 = sphi 0, %s43
    %s60 = sphi 0, %s44
    %s68 = sphi 0, %s70
    %s71 = sphi 0, %s68
    %s72 = sphi 0, %s71
    %s88 = sphi 0, %s72
    %s94 = sphi 0, %s96
    %s97 = sphi 0, %s94
    %s98 = sphi 0, %s97
    %s114 = sphi 0, %s98
    %s122 = sphi 0, %s124
    %s125 = sphi 0, %s122
    %s126 = sphi 0, %s125
    %s142 = sphi 0, %s126
  $region4: #{pnasnet_forward.5} parent=0 // loop_header_branch
    %12 = sbr.rel (%p10) target = $region8
  $region5: #{pnasnet_forward.5} parent=0 // loop_body
    %s14 = ssub.s32 %s9, 1
    %s15 = ssub.s32 %s9, 2
    %s25 = sadd.s32 1, %s18
    %p26 = scmp.ge.s32.totalorder %s25, 1
    %s27 = scalar_select %p26, 0, %s25
    %s28 = sadd.s32 1, %s17
    %s29 = scalar_select %p26, %s28, %s17
    %p30 = scmp.ge.s32.totalorder %s29, 1
    %s31 = scalar_select %p30, 0, %s29
    %s32 = sadd.s32 1, %s16
    %s33 = scalar_select %p30, %s32, %s16
    %p34 = scmp.ge.s32.totalorder %s33, 2
    %s35 = scalar_select %p34, 0, %s33
    %s36 = ssub.s32 %s16, %s35
    %s37 = ssub.s32 %s18, %s27
    %s38 = sor.u32 %s36, %s37
    %p39 = scmp.eq.s32.totalorder %s38, 0
    %s41 = sadd.s32 %s40, 1
    %s42 = scalar_select %p39, %s40, %s41
    %p45 = pneg %p39
    %p46 = scmp.eq.s32.totalorder %s9, 1
    %p47 = por %p45, %p46
    %p48 = scmp.ne.s32.totalorder %s40, %s43
    %p49 = scmp.eq.s32.totalorder %s9, 0
    %p50 = por %p48, %p49
    %p51 = scmp.ne.s32.totalorder %s40, %s43
    %p52 = scmp.eq.s32.totalorder %s14, 1
    %p53 = por %p51, %p52
    %p54 = scmp.ne.s32.totalorder %s43, %s44
    %p55 = scmp.eq.s32.totalorder %s14, 0
    %p56 = por %p54, %p55
    %p57 = scmp.ne.s32.totalorder %s43, %s44
    %p58 = scmp.eq.s32.totalorder %s15, 1
    %p59 = por %p57, %p58
    %p61 = scmp.ne.s32.totalorder %s44, %s60
    %p62 = scmp.eq.s32.totalorder %s15, 0
    %p63 = por %p61, %p62
    %s64 = ssub.s32 %s18, %s27
    %s65 = ssub.s32 %s17, %s31
    %s66 = sor.u32 %s64, %s65
    %p67 = scmp.eq.s32.totalorder %s66, 0
    %s69 = sadd.s32 %s68, 1
    %s70 = scalar_select %p67, %s68, %s69
    %p73 = pneg %p67
    %p74 = scmp.eq.s32.totalorder %s9, 1
    %p75 = por %p73, %p74
    %p76 = scmp.ne.s32.totalorder %s68, %s71
    %p77 = scmp.eq.s32.totalorder %s9, 0
    %p78 = por %p76, %p77
    %p79 = scmp.ne.s32.totalorder %s68, %s71
    %p80 = scmp.eq.s32.totalorder %s14, 1
    %p81 = por %p79, %p80
    %p82 = scmp.ne.s32.totalorder %s71, %s72
    %p83 = scmp.eq.s32.totalorder %s14, 0
    %p84 = por %p82, %p83
    %p85 = scmp.ne.s32.totalorder %s71, %s72
    %p86 = scmp.eq.s32.totalorder %s15, 1
    %p87 = por %p85, %p86
    %p89 = scmp.ne.s32.totalorder %s72, %s88
    %p90 = scmp.eq.s32.totalorder %s15, 0
    %p91 = por %p89, %p90
    %s92 = ssub.s32 %s17, %s31
    %p93 = scmp.eq.s32.totalorder %s92, 0
    %s95 = sadd.s32 %s94, 1
    %s96 = scalar_select %p93, %s94, %s95
    %p99 = pneg %p93
    %p100 = scmp.eq.s32.totalorder %s9, 1
    %p101 = por %p99, %p100
    %p102 = scmp.ne.s32.totalorder %s94, %s97
    %p103 = scmp.eq.s32.totalorder %s9, 0
    %p104 = por %p102, %p103
    %p105 = scmp.ne.s32.totalorder %s94, %s97
    %p106 = scmp.eq.s32.totalorder %s14, 1
    %p107 = por %p105, %p106
    %p108 = scmp.ne.s32.totalorder %s97, %s98
    %p109 = scmp.eq.s32.totalorder %s14, 0
    %p110 = por %p108, %p109
    %p111 = scmp.ne.s32.totalorder %s97, %s98
    %p112 = scmp.eq.s32.totalorder %s15, 1
    %p113 = por %p111, %p112
    %p115 = scmp.ne.s32.totalorder %s98, %s114
    %p116 = scmp.eq.s32.totalorder %s15, 0
    %p117 = por %p115, %p116
    %s118 = ssub.s32 %s16, %s35
    %s119 = ssub.s32 %s17, %s31
    %s120 = sor.u32 %s118, %s119
    %p121 = scmp.eq.s32.totalorder %s120, 0
    %s123 = sadd.s32 %s122, 1
    %s124 = scalar_select %p121, %s122, %s123
    %p127 = pneg %p121
    %p128 = scmp.eq.s32.totalorder %s9, 1
    %p129 = por %p127, %p128
    %p130 = scmp.ne.s32.totalorder %s122, %s125
    %p131 = scmp.eq.s32.totalorder %s9, 0
    %p132 = por %p130, %p131
    %p133 = scmp.ne.s32.totalorder %s122, %s125
    %p134 = scmp.eq.s32.totalorder %s14, 1
    %p135 = por %p133, %p134
    %p136 = scmp.ne.s32.totalorder %s125, %s126
    %p137 = scmp.eq.s32.totalorder %s14, 0
    %p138 = por %p136, %p137
    %p139 = scmp.ne.s32.totalorder %s125, %s126
    %p140 = scmp.eq.s32.totalorder %s15, 1
    %p141 = por %p139, %p140
    %p143 = scmp.ne.s32.totalorder %s126, %s142
    %p144 = scmp.eq.s32.totalorder %s15, 0
    %p145 = por %p143, %p144
    %p146 = scmp.le.s32.totalorder 1, %s9
    %p147 = scmp.lt.s32.totalorder %s9, 3
    %p148 = pnand %p146, %p147
    %p149 = pneg %p148
    // Predicated region
    $region9: #{pnasnet_forward.5} parent=5 // pred_check
      _
    $region10: #{pnasnet_forward.5} parent=5 // pred_check_branch
      %151 = sbr.rel (%p148) target = $region12
    $region11: #{pnasnet_forward.5} parent=5 // pred_region
      %s152 = ssub.s32 %s9, 1
      // Predicated region
      $region13: #{pnasnet_forward.5} parent=11 // pred_check
        %p153 = pneg %p84
      $region14: #{pnasnet_forward.5} parent=11 // pred_check_branch
        %155 = sbr.rel (%p153) target = $region16
      $region15: #{pnasnet_forward.5} parent=11 // pred_region
        %s156 = smul.u32 16, %s21
        %p157 = scmp.lt.s32.totalorder %s156, 15
        %s158 = scalar_select %p157, %s156, 15
        %p159 = scmp.lt.s32.totalorder %s20, 0
        %s160 = scalar_select %p159, %s20, 0
        %s161 = sadd.s32 %s160, %s158
        %s162 = smul.addr %s161, 4
        %s163 = scalar_lea.vmem %s1, %s162
        %s164 = smul.u32 16, %s21
      $region16: #{pnasnet_forward.5} parent=11 // pred_fallthru
        _
      // Predicated region
      $region17: #{pnasnet_forward.5} parent=11 // pred_check
        %p165 = pneg %p110
      $region18: #{pnasnet_forward.5} parent=11 // pred_check_branch
        %167 = sbr.rel (%p165) target = $region20
      $region19: #{pnasnet_forward.5} parent=11 // pred_region
        %p168 = scmp.lt.s32.totalorder %s20, 0
        %s169 = scalar_select %p168, %s20, 0
        %s170 = scalar_lea.vmem %s2, %s169
      $region20: #{pnasnet_forward.5} parent=11 // pred_fallthru
        _
    $region12: #{pnasnet_forward.5} parent=5 // pred_fallthru
      _
    %p171 = scmp.lt.s32.totalorder %s9, 2
    // Predicated region
    $region21: #{pnasnet_forward.5} parent=5 // pred_check
      %p172 = pneg %p171
    $region22: #{pnasnet_forward.5} parent=5 // pred_check_branch
      %174 = sbr.rel (%p172) target = $region24
    $region23: #{pnasnet_forward.5} parent=5 // pred_region
      // Predicated region
      $region25: #{pnasnet_forward.5} parent=23 // pred_check
        %p175 = pneg %p50
      $region26: #{pnasnet_forward.5} parent=23 // pred_check_branch
        %177 = sbr.rel (%p175) target = $region28
      $region27: #{pnasnet_forward.5} parent=23 // pred_region
        %s178 = smul.u32 8, %s16
        %p179 = scmp.lt.s32.totalorder %s178, 15
        %s180 = scalar_select %p179, %s178, 15
        %p181 = scmp.lt.s32.totalorder %s18, 0
        %s182 = scalar_select %p181, %s18, 0
        %s183 = sadd.s32 %s182, %s180
        %s184 = smul.addr %s183, 4
        %s185 = scalar_lea.vmem %s0, %s184
        %s186 = smul.u32 8, %s16
      $region28: #{pnasnet_forward.5} parent=23 // pred_fallthru
        _
    $region24: #{pnasnet_forward.5} parent=5 // pred_fallthru
      _
    %p187 = scmp.le.s32.totalorder 1, %s9
    %p188 = scmp.lt.s32.totalorder %s9, 3
    %p189 = pnand %p187, %p188
    %p190 = pneg %p189
    // Predicated region
    $region29: #{pnasnet_forward.5} parent=5 // pred_check
      _
    $region30: #{pnasnet_forward.5} parent=5 // pred_check_branch
      %192 = sbr.rel (%p189) target = $region32
    $region31: #{pnasnet_forward.5} parent=5 // pred_region
      %s193 = ssub.s32 %s9, 1
      %s194 = smul.u32 8, %s19
      %p195 = scmp.lt.s32.totalorder %s194, 15
      %s196 = scalar_select %p195, %s194, 15
      %p197 = scmp.lt.s32.totalorder %s21, 0
      %s198 = scalar_select %p197, %s21, 0
      %s199 = sadd.s32 %s198, %s196
      %s200 = smul.addr %s199, 4
      %s201 = scalar_lea.vmem %s0, %s200
      %p202 = pneg %p56
      %p203 = pneg %p53
      %s204 = smul.u32 16, %s21
      %p205 = scmp.lt.s32.totalorder %s204, 15
      %s206 = scalar_select %p205, %s204, 15
      %p207 = scmp.lt.s32.totalorder %s20, 0
      %s208 = scalar_select %p207, %s20, 0
      %s209 = sadd.s32 %s208, %s206
      %s210 = smul.addr %s209, 4
      %s211 = scalar_lea.vmem %s1, %s210
      %p212 = pneg %p84
      %p213 = pneg %p81
      %p214 = scmp.lt.s32.totalorder %s20, 0
      %s215 = scalar_select %p214, %s20, 0
      %s216 = scalar_lea.vmem %s2, %s215
      %p217 = pneg %p110
      %p218 = pneg %p107
      %p219 = pneg %p138
      %p220 = pneg %p135
      %s221 = smul.u32 8, %s19
      %p222 = scmp.lt.s32.totalorder %s221, 15
      %s223 = scalar_select %p222, %s221, 15
      %p224 = scmp.lt.s32.totalorder %s20, 0
      %s225 = scalar_select %p224, %s20, 0
      %s226 = sadd.s32 %s225, %s223
      %s227 = smul.addr %s226, 4
      %s228 = scalar_lea.vmem %s3, %s227
      %s229 = smul.u32 8, %s19
      %p230 = scmp.lt.s32.totalorder %s229, 15
      %s231 = scalar_select %p230, %s229, 15
      %p232 = scmp.lt.s32.totalorder %s21, 0
      %s233 = scalar_select %p232, %s21, 0
      %s234 = sadd.s32 %s233, %s231
      %s235 = smul.addr %s234, 4
      %s236 = scalar_lea.vmem %s0, %s235
      %s237 = smul.u32 8, %s19
      %s238 = smul.u32 16, %s21
      %p239 = scmp.lt.s32.totalorder %s238, 15
      %s240 = scalar_select %p239, %s238, 15
      %p241 = scmp.lt.s32.totalorder %s20, 0
      %s242 = scalar_select %p241, %s20, 0
      %s243 = sadd.s32 %s242, %s240
      %s244 = smul.addr %s243, 4
      %s245 = scalar_lea.vmem %s1, %s244
      %s246 = smul.u32 16, %s21
      %p247 = scmp.lt.s32.totalorder %s20, 0
      %s248 = scalar_select %p247, %s20, 0
      %s249 = scalar_lea.vmem %s2, %s248
      %s250 = smul.u32 8, %s19
      %p251 = scmp.lt.s32.totalorder %s250, 15
      %s252 = scalar_select %p251, %s250, 15
      %p253 = scmp.lt.s32.totalorder %s20, 0
      %s254 = scalar_select %p253, %s20, 0
      %s255 = sadd.s32 %s254, %s252
      %s256 = smul.addr %s255, 4
      %s257 = scalar_lea.vmem %s3, %s256
      %s258 = smul.u32 8, %s19
      %p259 = scmp.eq.s32.totalorder %s21, 0
      // Predicated region
      $region33: #{pnasnet_forward.5} parent=31 // pred_check
        %p260 = pneg %p259
      $region34: #{pnasnet_forward.5} parent=31 // pred_check_branch
        %262 = sbr.rel (%p260) target = $region36
      $region35: #{pnasnet_forward.5} parent=31 // pred_region
        %263 = vst [vmem:[#allocation2] sm:$0xff] 0.0
        %264 = vst [vmem:[#allocation2 + $0x8] sm:$0xff] 0.0
        %265 = vst [vmem:[#allocation2 + $0x10] sm:$0xff] 0.0
        %266 = vst [vmem:[#allocation2 + $0x18] sm:$0xff] 0.0
        %267 = vst [vmem:[#allocation2 + $0x20] sm:$0xff] 0.0
        %268 = vst [vmem:[#allocation2 + $0x28] sm:$0xff] 0.0
        %269 = vst [vmem:[#allocation2 + $0x30] sm:$0xff] 0.0
        %270 = vst [vmem:[#allocation2 + $0x38] sm:$0xff] 0.0
      $region36: #{pnasnet_forward.5} parent=31 // pred_fallthru
        _
      %v271 = vld [vmem:[#allocation2] sm:$0xff]
      %v272 = vld [vmem:[#allocation2 + $0x8] sm:$0xff]
      %v273 = vld [vmem:[#allocation2 + $0x10] sm:$0xff]
      %v274 = vld [vmem:[#allocation2 + $0x18] sm:$0xff]
      %v275 = vld [vmem:[#allocation2 + $0x20] sm:$0xff]
      %v276 = vld [vmem:[#allocation2 + $0x28] sm:$0xff]
      %v277 = vld [vmem:[#allocation2 + $0x30] sm:$0xff]
      %v278 = vld [vmem:[#allocation2 + $0x38] sm:$0xff]
      %v279 = vld [vmem:[%s236] sm:$0xf]
      %v280 = vld [vmem:[%s236 + $0x4] sm:$0xf]
      %v281 = vld [vmem:[%s236 + $0x8] sm:$0xf]
      %v282 = vld [vmem:[%s236 + $0xc] sm:$0xf]
      %v283 = vld [vmem:[%s236 + $0x10] sm:$0xf]
      %v284 = vld [vmem:[%s236 + $0x14] sm:$0xf]
      %v285 = vld [vmem:[%s236 + $0x18] sm:$0xf]
      %v286 = vld [vmem:[%s236 + $0x1c] sm:$0xf]
      %v287 = vld [vmem:[%s245] sm:$0xf]
      %v288 = vld [vmem:[%s245 + $0x4] sm:$0xf]
      %v289 = vld [vmem:[%s245 + $0x8] sm:$0xf]
      %v290 = vld [vmem:[%s245 + $0xc] sm:$0xf]
      %v291 = vld [vmem:[%s245 + $0x10] sm:$0xf]
      %v292 = vld [vmem:[%s245 + $0x14] sm:$0xf]
      %v293 = vld [vmem:[%s245 + $0x18] sm:$0xf]
      %v294 = vld [vmem:[%s245 + $0x1c] sm:$0xf]
      %v295 = vld [vmem:[%s245 + $0x20] sm:$0xf]
      %v296 = vld [vmem:[%s245 + $0x24] sm:$0xf]
      %v297 = vld [vmem:[%s245 + $0x28] sm:$0xf]
      %v298 = vld [vmem:[%s245 + $0x2c] sm:$0xf]
      %v299 = vld [vmem:[%s245 + $0x30] sm:$0xf]
      %v300 = vld [vmem:[%s245 + $0x34] sm:$0xf]
      %v301 = vld [vmem:[%s245 + $0x38] sm:$0xf]
      %v302 = vld [vmem:[%s245 + $0x3c] sm:$0xf]
      %v311 = vunpack.c.l.b16 %v279
      %v312 = vunpack.c.l.b16 %v280
      %v313 = vunpack.c.l.b16 %v281
      %v314 = vunpack.c.l.b16 %v282
      %v315 = vunpack.c.l.b16 %v283
      %v316 = vunpack.c.l.b16 %v284
      %v317 = vunpack.c.l.b16 %v285
      %v318 = vunpack.c.l.b16 %v286
      %v319 = vpack.c.b16 %v312, %v311
      %v320 = vpack.c.b16 %v314, %v313
      %v321 = vpack.c.b16 %v316, %v315
      %v322 = vpack.c.b16 %v318, %v317
      %v343 = vunpack.c.l.b16 %v287
      %v344 = vunpack.c.l.b16 %v288
      %v345 = vunpack.c.l.b16 %v289
      %v346 = vunpack.c.l.b16 %v290
      %v347 = vunpack.c.l.b16 %v291
      %v348 = vunpack.c.l.b16 %v292
      %v349 = vunpack.c.l.b16 %v293
      %v350 = vunpack.c.l.b16 %v294
      %v351 = vunpack.c.l.b16 %v295
      %v352 = vunpack.c.l.b16 %v296
      %v353 = vunpack.c.l.b16 %v297
      %v354 = vunpack.c.l.b16 %v298
      %v355 = vunpack.c.l.b16 %v299
      %v356 = vunpack.c.l.b16 %v300
      %v357 = vunpack.c.l.b16 %v301
      %v358 = vunpack.c.l.b16 %v302
      %v359 = vpack.c.b16 %v344, %v343
      %v360 = vpack.c.b16 %v346, %v345
      %v361 = vpack.c.b16 %v348, %v347
      %v362 = vpack.c.b16 %v350, %v349
      %v363 = vpack.c.b16 %v352, %v351
      %v364 = vpack.c.b16 %v354, %v353
      %v365 = vpack.c.b16 %v356, %v355
      %v366 = vpack.c.b16 %v358, %v357
      %375 = vmatpush.bf16.msra.mxu0 %v366
      %376 = vmatpush.bf16.msra.mxu0 %v365
      %377 = vmatpush.bf16.msra.mxu0 %v364
      %378 = vmatpush.bf16.msra.mxu0 %v363
      %379 = vmatpush.bf16.msra.mxu0 %v362
      %380 = vmatpush.bf16.msra.mxu0 %v361
      %381 = vmatpush.bf16.msra.mxu0 %v360
      %382 = vmatpush.bf16.msra.mxu0 %v359
      %383 = vmatmul.bf16.gmra.mxu0 %v319
      %v384 = vpop.f32.mrf.mxu0
      %v385 = vadd.f32 0.0, %v384
      %v386 = vpop.f32.mrf.mxu0
      %v387 = vadd.f32 0.0, %v386
      %388 = vmatmul.bf16.gmra.mxu0 %v320
      %v389 = vpop.f32.mrf.mxu0
      %v390 = vadd.f32 0.0, %v389
      %v391 = vpop.f32.mrf.mxu0
      %v392 = vadd.f32 0.0, %v391
      %393 = vmatmul.bf16.gmra.mxu0 %v321
      %v394 = vpop.f32.mrf.mxu0
      %v395 = vadd.f32 0.0, %v394
      %v396 = vpop.f32.mrf.mxu0
      %v397 = vadd.f32 0.0, %v396
      %398 = vmatmul.bf16.gmra.mxu0 %v322
      %v399 = vpop.f32.mrf.mxu0
      %v400 = vadd.f32 0.0, %v399
      %v401 = vpop.f32.mrf.mxu0
      %v402 = vadd.f32 0.0, %v401
      %403 = vdwg.mxu0
      %v404 = vadd.f32 %v271, %v385
      %v405 = vadd.f32 %v272, %v387
      %v406 = vadd.f32 %v273, %v390
      %v407 = vadd.f32 %v274, %v392
      %v408 = vadd.f32 %v275, %v395
      %v409 = vadd.f32 %v276, %v397
      %v410 = vadd.f32 %v277, %v400
      %v411 = vadd.f32 %v278, %v402
      %412 = vst [vmem:[#allocation2] sm:$0xff] %v404
      %413 = vst [vmem:[#allocation2 + $0x8] sm:$0xff] %v405
      %414 = vst [vmem:[#allocation2 + $0x10] sm:$0xff] %v406
      %415 = vst [vmem:[#allocation2 + $0x18] sm:$0xff] %v407
      %416 = vst [vmem:[#allocation2 + $0x20] sm:$0xff] %v408
      %417 = vst [vmem:[#allocation2 + $0x28] sm:$0xff] %v409
      %418 = vst [vmem:[#allocation2 + $0x30] sm:$0xff] %v410
      %419 = vst [vmem:[#allocation2 + $0x38] sm:$0xff] %v411
      // Predicated region
      $region37: #{pnasnet_forward.5} parent=31 // pred_check
        %p420 = pneg %p259
      $region38: #{pnasnet_forward.5} parent=31 // pred_check_branch
        %422 = sbr.rel (%p420) target = $region40
      $region39: #{pnasnet_forward.5} parent=31 // pred_region
        %v423 = vld [vmem:[#allocation2] sm:$0xff]
        %v424 = vld [vmem:[#allocation2 + $0x8] sm:$0xff]
        %v425 = vld [vmem:[#allocation2 + $0x10] sm:$0xff]
        %v426 = vld [vmem:[#allocation2 + $0x18] sm:$0xff]
        %v427 = vld [vmem:[#allocation2 + $0x20] sm:$0xff]
        %v428 = vld [vmem:[#allocation2 + $0x28] sm:$0xff]
        %v429 = vld [vmem:[#allocation2 + $0x30] sm:$0xff]
        %v430 = vld [vmem:[#allocation2 + $0x38] sm:$0xff]
        %v431 = vld [vmem:[%s249] sm:$0x1]
        %v433 = vperm.slane %v431, 0
        %v435 = vadd.f32 %v423, %v433
        %v436 = vadd.f32 %v424, %v433
        %v437 = vadd.f32 %v425, %v433
        %v438 = vadd.f32 %v426, %v433
        %v439 = vadd.f32 %v427, %v433
        %v440 = vadd.f32 %v428, %v433
        %v441 = vadd.f32 %v429, %v433
        %v442 = vadd.f32 %v430, %v433
        %v443 = vpack.c.bf16 %v435, %v435
        %v444 = vpack.c.bf16 %v436, %v436
        %v445 = vpack.c.bf16 %v437, %v437
        %v446 = vpack.c.bf16 %v438, %v438
        %v447 = vpack.c.bf16 %v439, %v439
        %v448 = vpack.c.bf16 %v440, %v440
        %v449 = vpack.c.bf16 %v441, %v441
        %v450 = vpack.c.bf16 %v442, %v442
        %451 = vst [vmem:[%s257] sm:$0xf] %v443
        %452 = vst [vmem:[%s257 + $0x4] sm:$0xf] %v444
        %453 = vst [vmem:[%s257 + $0x8] sm:$0xf] %v445
        %454 = vst [vmem:[%s257 + $0xc] sm:$0xf] %v446
        %455 = vst [vmem:[%s257 + $0x10] sm:$0xf] %v447
        %456 = vst [vmem:[%s257 + $0x14] sm:$0xf] %v448
        %457 = vst [vmem:[%s257 + $0x18] sm:$0xf] %v449
        %458 = vst [vmem:[%s257 + $0x1c] sm:$0xf] %v450
      $region40: #{pnasnet_forward.5} parent=31 // pred_fallthru
        _
      %s459 = smul.u32 8, %s19
      %p460 = scmp.lt.s32.totalorder %s459, 15
      %s461 = scalar_select %p460, %s459, 15
      %p462 = scmp.lt.s32.totalorder %s20, 0
      %s463 = scalar_select %p462, %s20, 0
      %s464 = sadd.s32 %s463, %s461
      %s465 = smul.addr %s464, 4
      %s466 = scalar_lea.vmem %s3, %s465
      // Predicated region
      $region41: #{pnasnet_forward.5} parent=31 // pred_check
        %p467 = pneg %p135
      $region42: #{pnasnet_forward.5} parent=31 // pred_check_branch
        %469 = sbr.rel (%p467) target = $region44
      $region43: #{pnasnet_forward.5} parent=31 // pred_region
        %s470 = smul.u32 8, %s19
      $region44: #{pnasnet_forward.5} parent=31 // pred_fallthru
        _
    $region32: #{pnasnet_forward.5} parent=5 // pred_fallthru
      _
    %p471 = scmp.le.s32.totalorder 2, %s9
    // Predicated region
    $region45: #{pnasnet_forward.5} parent=5 // pred_check
      %p472 = pneg %p471
    $region46: #{pnasnet_forward.5} parent=5 // pred_check_branch
      %474 = sbr.rel (%p472) target = $region48
    $region47: #{pnasnet_forward.5} parent=5 // pred_region
      %s475 = ssub.s32 %s9, 2
      // Predicated region
      $region49: #{pnasnet_forward.5} parent=47 // pred_check
        %p476 = pneg %p141
      $region50: #{pnasnet_forward.5} parent=47 // pred_check_branch
        %478 = sbr.rel (%p476) target = $region52
      $region51: #{pnasnet_forward.5} parent=47 // pred_region
        %s479 = smul.u32 8, %s22
        %p480 = scmp.lt.s32.totalorder %s479, 15
        %s481 = scalar_select %p480, %s479, 15
        %p482 = scmp.lt.s32.totalorder %s23, 0
        %s483 = scalar_select %p482, %s23, 0
        %s484 = sadd.s32 %s483, %s481
        %s485 = smul.addr %s484, 4
        %s486 = scalar_lea.vmem %s3, %s485
      $region52: #{pnasnet_forward.5} parent=47 // pred_fallthru
        _
    $region48: #{pnasnet_forward.5} parent=5 // pred_fallthru
      _
  $region6: #{pnasnet_forward.5} parent=0 // loop_footer
    %s13 = sadd.s32 1, %s9
  $region7: #{pnasnet_forward.5} parent=0 // loop_footer_branch
    %8 = sbr.rel target = $region3
  $region8: #{pnasnet_forward.5} parent=0 // loop_exit
    _

// kernel: pnasnet_forward.8
$region0: #{pnasnet_forward.8}
  #allocation0 [shape = 'u32[]', space=smem, size = 0x4, offset = 0x4, fixed_abs, tag = 'smem constant byte address 0x4 - core index']
  #allocation1 [shape = 'u32[72,128]{1,0:T(1,128)}', space=vmem, size = 0x9000, scoped, tag = 'internal scratch']
  #allocation2 [shape = 'f32[2,128]{1,0:T(2,128)}', space=vmem, size = 0x400, scoped, tag = 'scratch operand']
  %s0 = inlined_call_operand.vmem [shape: bf16[2,64,128], index: 0, kind: input, shape index: {}]
  %s1 = inlined_call_operand.vmem [shape: f32[2,128], index: 1, kind: output, shape index: {}]
  %s2 = sld [smem:[#allocation0]]
  $region22: #{pnasnet_forward.8} parent=0
    _
  %s4 = ssub.s32 1, %s2
  %s5 = scalar_select 0, %s4, %s2
  // Predicated region
  $region2: #{pnasnet_forward.8} parent=0 // pred_check
    _
  $region3: #{pnasnet_forward.8} parent=0 // pred_check_branch
    %7 = sbr.rel (0) target = $region5
  $region4: #{pnasnet_forward.8} parent=0 // pred_region
    _
  $region5: #{pnasnet_forward.8} parent=0 // pred_fallthru
    _
  %p8 = scmp.eq.s32.totalorder 0, 0
  // Predicated region
  $region6: #{pnasnet_forward.8} parent=0 // pred_check
    %p9 = pneg %p8
  $region7: #{pnasnet_forward.8} parent=0 // pred_check_branch
    %11 = sbr.rel (%p9) target = $region9
  $region8: #{pnasnet_forward.8} parent=0 // pred_region
    %12 = vst [vmem:[#allocation2] sm:$0x3] 0.0
  $region9: #{pnasnet_forward.8} parent=0 // pred_fallthru
    _
  %v13 = vld [vmem:[#allocation2] sm:$0x3]
  %v14 = vld [vmem:[%s0] sm:$0xf]
  %v15 = vld [vmem:[%s0 + $0x4] sm:$0xf]
  %v16 = vld [vmem:[%s0 + $0x8] sm:$0xf]
  %v17 = vld [vmem:[%s0 + $0xc] sm:$0xf]
  %v18 = vld [vmem:[%s0 + $0x10] sm:$0xf]
  %v19 = vld [vmem:[%s0 + $0x14] sm:$0xf]
  %v20 = vld [vmem:[%s0 + $0x18] sm:$0xf]
  %v21 = vld [vmem:[%s0 + $0x1c] sm:$0xf]
  %v22 = vld [vmem:[%s0 + $0x20] sm:$0xf]
  %v23 = vld [vmem:[%s0 + $0x24] sm:$0xf]
  %v24 = vld [vmem:[%s0 + $0x28] sm:$0xf]
  %v25 = vld [vmem:[%s0 + $0x2c] sm:$0xf]
  %v26 = vld [vmem:[%s0 + $0x30] sm:$0xf]
  %v27 = vld [vmem:[%s0 + $0x34] sm:$0xf]
  %v28 = vld [vmem:[%s0 + $0x38] sm:$0xf]
  %v29 = vld [vmem:[%s0 + $0x3c] sm:$0xf]
  %v30 = vunpack.c.l.bf16 %v14
  %v31 = vunpack.c.l.bf16 %v15
  %v32 = vunpack.c.l.bf16 %v16
  %v33 = vunpack.c.l.bf16 %v17
  %v34 = vunpack.c.l.bf16 %v18
  %v35 = vunpack.c.l.bf16 %v19
  %v36 = vunpack.c.l.bf16 %v20
  %v37 = vunpack.c.l.bf16 %v21
  %v38 = vunpack.c.l.bf16 %v22
  %v39 = vunpack.c.l.bf16 %v23
  %v40 = vunpack.c.l.bf16 %v24
  %v41 = vunpack.c.l.bf16 %v25
  %v42 = vunpack.c.l.bf16 %v26
  %v43 = vunpack.c.l.bf16 %v27
  %v44 = vunpack.c.l.bf16 %v28
  %v45 = vunpack.c.l.bf16 %v29
  %v46 = vadd.f32 %v30, %v31
  %v47 = vadd.f32 %v46, %v32
  %v48 = vadd.f32 %v47, %v33
  %v49 = vadd.f32 %v48, %v34
  %v50 = vadd.f32 %v49, %v35
  %v51 = vadd.f32 %v50, %v36
  %v52 = vadd.f32 %v51, %v37
  %v53 = vrot.slane %v52, 4
  %v54 = vadd.f32 %v52, %v53
  %v55 = vrot.slane %v54, 2
  %v56 = vadd.f32 %v54, %v55
  %v57 = vrot.slane %v56, 1
  %v58 = vadd.f32 %v56, %v57
  %v59 = vadd.f32 %v38, %v39
  %v60 = vadd.f32 %v59, %v40
  %v61 = vadd.f32 %v60, %v41
  %v62 = vadd.f32 %v61, %v42
  %v63 = vadd.f32 %v62, %v43
  %v64 = vadd.f32 %v63, %v44
  %v65 = vadd.f32 %v64, %v45
  %v66 = vrot.slane %v65, 4
  %v67 = vadd.f32 %v65, %v66
  %v68 = vrot.slane %v67, 2
  %v69 = vadd.f32 %v67, %v68
  %v70 = vrot.slane %v69, 1
  %v71 = vadd.f32 %v69, %v70
  %vm74 = vcmask 1041409
  %v75 = vsel %vm74, %v71, %v58
  %v77 = vadd.f32 %v13, %v75
  %78 = vst [vmem:[#allocation2] sm:$0x3] %v77
  // Predicated region
  $region10: #{pnasnet_forward.8} parent=0 // pred_check
    %p79 = pneg %p8
  $region11: #{pnasnet_forward.8} parent=0 // pred_check_branch
    %81 = sbr.rel (%p79) target = $region13
  $region12: #{pnasnet_forward.8} parent=0 // pred_region
    %v82 = vld [vmem:[#allocation2] sm:$0x3]
    %v83 = vmul.f32 %v82, 0.015625
    %84 = vst [vmem:[%s1] sm:$0x3] %v83
  $region13: #{pnasnet_forward.8} parent=0 // pred_fallthru
    _
  // Predicated region
  $region14: #{pnasnet_forward.8} parent=0 // pred_check
    _
  $region15: #{pnasnet_forward.8} parent=0 // pred_check_branch
    %86 = sbr.rel (0) target = $region17
  $region16: #{pnasnet_forward.8} parent=0 // pred_region
    _
  $region17: #{pnasnet_forward.8} parent=0 // pred_fallthru
    _
  // Predicated region
  $region18: #{pnasnet_forward.8} parent=0 // pred_check
    _
  $region19: #{pnasnet_forward.8} parent=0 // pred_check_branch
    %88 = sbr.rel (0) target = $region21
  $region20: #{pnasnet_forward.8} parent=0 // pred_region
    _
  $region21: #{pnasnet_forward.8} parent=0 // pred_fallthru
    _

// kernel: pnasnet_forward.6
$region0: #{pnasnet_forward.6}
  #allocation0 [shape = 'u32[]', space=smem, size = 0x4, offset = 0x4, fixed_abs, tag = 'smem constant byte address 0x4 - core index']
  #allocation1 [shape = 'u32[72,128]{1,0:T(1,128)}', space=vmem, size = 0x9000, scoped, tag = 'internal scratch']
  %s0 = inlined_call_operand.vmem [shape: bf16[2,10,10,128], index: 0, kind: input, shape index: {}]
  %s1 = inlined_call_operand.vmem [shape: f32[9,1,128], index: 1, kind: input, shape index: {}]
  %s2 = inlined_call_operand.vmem [shape: bf16[128,128], index: 2, kind: input, shape index: {}]
  %s3 = inlined_call_operand.vmem [shape: bf16[128,128], index: 3, kind: input, shape index: {}]
  %s4 = inlined_call_operand.vmem [shape: f32[1,128], index: 4, kind: input, shape index: {}]
  %s5 = inlined_call_operand.vmem [shape: bf16[2,64,128], index: 5, kind: output, shape index: {}]
  %s6 = sld [smem:[#allocation0]]
  $region53: #{pnasnet_forward.6} parent=0
    _
  %s8 = ssub.s32 1, %s6
  %s9 = scalar_select 0, %s8, %s6
  loop: start=0, step=1, limit=4
  $region2: #{pnasnet_forward.6} parent=0 // loop_pre_header
    _
  $region3: #{pnasnet_forward.6} parent=0 // loop_header
    %s11 = sphi 0, %s15
    %p12 = scmp.ge.s32.totalorder %s11, 4
    %s21 = sphi 0, %s23
    %s24 = sphi 0, %s21
    %s25 = sphi 0, %s24
    %s41 = sphi 0, %s25
    %s45 = sphi 0, %s45
    %s47 = sphi 0, %s45
    %s48 = sphi 0, %s47
    %s62 = sphi 0, %s48
    %s66 = sphi 0, %s66
    %s68 = sphi 0, %s66
    %s69 = sphi 0, %s68
    %s83 = sphi 0, %s69
    %s87 = sphi 0, %s87
    %s89 = sphi 0, %s87
    %s90 = sphi 0, %s89
    %s104 = sphi 0, %s90
    %s108 = sphi 0, %s108
    %s110 = sphi 0, %s108
    %s111 = sphi 0, %s110
    %s125 = sphi 0, %s111
    %s131 = sphi 0, %s133
    %s134 = sphi 0, %s131
    %s135 = sphi 0, %s134
    %s151 = sphi 0, %s135
  $region4: #{pnasnet_forward.6} parent=0 // loop_header_branch
    %14 = sbr.rel (%p12) target = $region8
  $region5: #{pnasnet_forward.6} parent=0 // loop_body
    %s16 = ssub.s32 %s11, 1
    %s17 = ssub.s32 %s11, 2
    %s18 = sadd.s32 %s11, 1
    %s19 = ssub.s32 %s11, %s18
    %p20 = scmp.eq.s32.totalorder %s19, 0
    %s22 = sadd.s32 %s21, 1
    %s23 = scalar_select %p20, %s21, %s22
    %p26 = pneg %p20
    %p27 = scmp.eq.s32.totalorder %s11, 1
    %p28 = por %p26, %p27
    %p29 = scmp.ne.s32.totalorder %s21, %s24
    %p30 = scmp.eq.s32.totalorder %s11, 0
    %p31 = por %p29, %p30
    %p32 = scmp.ne.s32.totalorder %s21, %s24
    %p33 = scmp.eq.s32.totalorder %s16, 1
    %p34 = por %p32, %p33
    %p35 = scmp.ne.s32.totalorder %s24, %s25
    %p36 = scmp.eq.s32.totalorder %s16, 0
    %p37 = por %p35, %p36
    %p38 = scmp.ne.s32.totalorder %s24, %s25
    %p39 = scmp.eq.s32.totalorder %s17, 1
    %p40 = por %p38, %p39
    %p42 = scmp.ne.s32.totalorder %s25, %s41
    %p43 = scmp.eq.s32.totalorder %s17, 0
    %p44 = por %p42, %p43
    %s46 = sadd.s32 %s45, 1
    %p49 = scmp.eq.s32.totalorder %s11, 1
    %p50 = scmp.ne.s32.totalorder %s45, %s47
    %p51 = scmp.eq.s32.totalorder %s11, 0
    %p52 = por %p50, %p51
    %p53 = scmp.ne.s32.totalorder %s45, %s47
    %p54 = scmp.eq.s32.totalorder %s16, 1
    %p55 = por %p53, %p54
    %p56 = scmp.ne.s32.totalorder %s47, %s48
    %p57 = scmp.eq.s32.totalorder %s16, 0
    %p58 = por %p56, %p57
    %p59 = scmp.ne.s32.totalorder %s47, %s48
    %p60 = scmp.eq.s32.totalorder %s17, 1
    %p61 = por %p59, %p60
    %p63 = scmp.ne.s32.totalorder %s48, %s62
    %p64 = scmp.eq.s32.totalorder %s17, 0
    %p65 = por %p63, %p64
    %s67 = sadd.s32 %s66, 1
    %p70 = scmp.eq.s32.totalorder %s11, 1
    %p71 = scmp.ne.s32.totalorder %s66, %s68
    %p72 = scmp.eq.s32.totalorder %s11, 0
    %p73 = por %p71, %p72
    %p74 = scmp.ne.s32.totalorder %s66, %s68
    %p75 = scmp.eq.s32.totalorder %s16, 1
    %p76 = por %p74, %p75
    %p77 = scmp.ne.s32.totalorder %s68, %s69
    %p78 = scmp.eq.s32.totalorder %s16, 0
    %p79 = por %p77, %p78
    %p80 = scmp.ne.s32.totalorder %s68, %s69
    %p81 = scmp.eq.s32.totalorder %s17, 1
    %p82 = por %p80, %p81
    %p84 = scmp.ne.s32.totalorder %s69, %s83
    %p85 = scmp.eq.s32.totalorder %s17, 0
    %p86 = por %p84, %p85
    %s88 = sadd.s32 %s87, 1
    %p91 = scmp.eq.s32.totalorder %s11, 1
    %p92 = scmp.ne.s32.totalorder %s87, %s89
    %p93 = scmp.eq.s32.totalorder %s11, 0
    %p94 = por %p92, %p93
    %p95 = scmp.ne.s32.totalorder %s87, %s89
    %p96 = scmp.eq.s32.totalorder %s16, 1
    %p97 = por %p95, %p96
    %p98 = scmp.ne.s32.totalorder %s89, %s90
    %p99 = scmp.eq.s32.totalorder %s16, 0
    %p100 = por %p98, %p99
    %p101 = scmp.ne.s32.totalorder %s89, %s90
    %p102 = scmp.eq.s32.totalorder %s17, 1
    %p103 = por %p101, %p102
    %p105 = scmp.ne.s32.totalorder %s90, %s104
    %p106 = scmp.eq.s32.totalorder %s17, 0
    %p107 = por %p105, %p106
    %s109 = sadd.s32 %s108, 1
    %p112 = scmp.eq.s32.totalorder %s11, 1
    %p113 = scmp.ne.s32.totalorder %s108, %s110
    %p114 = scmp.eq.s32.totalorder %s11, 0
    %p115 = por %p113, %p114
    %p116 = scmp.ne.s32.totalorder %s108, %s110
    %p117 = scmp.eq.s32.totalorder %s16, 1
    %p118 = por %p116, %p117
    %p119 = scmp.ne.s32.totalorder %s110, %s111
    %p120 = scmp.eq.s32.totalorder %s16, 0
    %p121 = por %p119, %p120
    %p122 = scmp.ne.s32.totalorder %s110, %s111
    %p123 = scmp.eq.s32.totalorder %s17, 1
    %p124 = por %p122, %p123
    %p126 = scmp.ne.s32.totalorder %s111, %s125
    %p127 = scmp.eq.s32.totalorder %s17, 0
    %p128 = por %p126, %p127
    %s129 = ssub.s32 %s11, %s18
    %p130 = scmp.eq.s32.totalorder %s129, 0
    %s132 = sadd.s32 %s131, 1
    %s133 = scalar_select %p130, %s131, %s132
    %p136 = pneg %p130
    %p137 = scmp.eq.s32.totalorder %s11, 1
    %p138 = por %p136, %p137
    %p139 = scmp.ne.s32.totalorder %s131, %s134
    %p140 = scmp.eq.s32.totalorder %s11, 0
    %p141 = por %p139, %p140
    %p142 = scmp.ne.s32.totalorder %s131, %s134
    %p143 = scmp.eq.s32.totalorder %s16, 1
    %p144 = por %p142, %p143
    %p145 = scmp.ne.s32.totalorder %s134, %s135
    %p146 = scmp.eq.s32.totalorder %s16, 0
    %p147 = por %p145, %p146
    %p148 = scmp.ne.s32.totalorder %s134, %s135
    %p149 = scmp.eq.s32.totalorder %s17, 1
    %p150 = por %p148, %p149
    %p152 = scmp.ne.s32.totalorder %s135, %s151
    %p153 = scmp.eq.s32.totalorder %s17, 0
    %p154 = por %p152, %p153
    %p155 = scmp.le.s32.totalorder 1, %s11
    %p156 = scmp.lt.s32.totalorder %s11, 3
    %p157 = pnand %p155, %p156
    %p158 = pneg %p157
    // Predicated region
    $region9: #{pnasnet_forward.6} parent=5 // pred_check
      _
    $region10: #{pnasnet_forward.6} parent=5 // pred_check_branch
      %160 = sbr.rel (%p157) target = $region12
    $region11: #{pnasnet_forward.6} parent=5 // pred_region
      %s161 = ssub.s32 %s11, 1
      // Predicated region
      $region13: #{pnasnet_forward.6} parent=11 // pred_check
        %p162 = pneg %p58
      $region14: #{pnasnet_forward.6} parent=11 // pred_check_branch
        %164 = sbr.rel (%p162) target = $region16
      $region15: #{pnasnet_forward.6} parent=11 // pred_region
        _
      $region16: #{pnasnet_forward.6} parent=11 // pred_fallthru
        _
      // Predicated region
      $region17: #{pnasnet_forward.6} parent=11 // pred_check
        %p165 = pneg %p79
      $region18: #{pnasnet_forward.6} parent=11 // pred_check_branch
        %167 = sbr.rel (%p165) target = $region20
      $region19: #{pnasnet_forward.6} parent=11 // pred_region
        _
      $region20: #{pnasnet_forward.6} parent=11 // pred_fallthru
        _
      // Predicated region
      $region21: #{pnasnet_forward.6} parent=11 // pred_check
        %p168 = pneg %p100
      $region22: #{pnasnet_forward.6} parent=11 // pred_check_branch
        %170 = sbr.rel (%p168) target = $region24
      $region23: #{pnasnet_forward.6} parent=11 // pred_region
        _
      $region24: #{pnasnet_forward.6} parent=11 // pred_fallthru
        _
      // Predicated region
      $region25: #{pnasnet_forward.6} parent=11 // pred_check
        %p171 = pneg %p121
      $region26: #{pnasnet_forward.6} parent=11 // pred_check_branch
        %173 = sbr.rel (%p171) target = $region28
      $region27: #{pnasnet_forward.6} parent=11 // pred_region
        _
      $region28: #{pnasnet_forward.6} parent=11 // pred_fallthru
        _
    $region12: #{pnasnet_forward.6} parent=5 // pred_fallthru
      _
    %p174 = scmp.lt.s32.totalorder %s11, 2
    // Predicated region
    $region29: #{pnasnet_forward.6} parent=5 // pred_check
      %p175 = pneg %p174
    $region30: #{pnasnet_forward.6} parent=5 // pred_check_branch
      %177 = sbr.rel (%p175) target = $region32
    $region31: #{pnasnet_forward.6} parent=5 // pred_region
      // Predicated region
      $region33: #{pnasnet_forward.6} parent=31 // pred_check
        %p178 = pneg %p31
      $region34: #{pnasnet_forward.6} parent=31 // pred_check_branch
        %180 = sbr.rel (%p178) target = $region36
      $region35: #{pnasnet_forward.6} parent=31 // pred_region
        %p181 = scmp.lt.s32.totalorder %s11, 1
        %s182 = scalar_select %p181, %s11, 1
        %s183 = smul.addr %s182, 20
        %s184 = smul.addr %s183, 4
        %s185 = scalar_lea.vmem %s0, %s184
      $region36: #{pnasnet_forward.6} parent=31 // pred_fallthru
        _
    $region32: #{pnasnet_forward.6} parent=5 // pred_fallthru
      _
    %p186 = scmp.le.s32.totalorder 1, %s11
    %p187 = scmp.lt.s32.totalorder %s11, 3
    %p188 = pnand %p186, %p187
    %p189 = pneg %p188
    // Predicated region
    $region37: #{pnasnet_forward.6} parent=5 // pred_check
      _
    $region38: #{pnasnet_forward.6} parent=5 // pred_check_branch
      %191 = sbr.rel (%p188) target = $region40
    $region39: #{pnasnet_forward.6} parent=5 // pred_region
      %s192 = ssub.s32 %s11, 1
      %p193 = scmp.lt.s32.totalorder %s16, 1
      %s194 = scalar_select %p193, %s16, 1
      %s195 = smul.addr %s194, 20
      %s196 = smul.addr %s195, 4
      %s197 = scalar_lea.vmem %s0, %s196
      %p198 = pneg %p37
      %p199 = pneg %p34
      %p200 = pneg %p58
      %p201 = pneg %p55
      %p202 = pneg %p79
      %p203 = pneg %p76
      %p204 = pneg %p100
      %p205 = pneg %p97
      %p206 = pneg %p121
      %p207 = pneg %p118
      %p208 = pneg %p147
      %p209 = pneg %p144
      %p210 = scmp.lt.s32.totalorder %s16, 1
      %s211 = scalar_select %p210, %s16, 1
      %s212 = smul.addr %s211, 8
      %s213 = smul.addr %s212, 4
      %s214 = scalar_lea.vmem %s5, %s213
      %p215 = scmp.lt.s32.totalorder %s16, 1
      %s216 = scalar_select %p215, %s16, 1
      %s217 = smul.addr %s216, 20
      %s218 = smul.addr %s217, 4
      %s219 = scalar_lea.vmem %s0, %s218
      %p220 = scmp.lt.s32.totalorder %s16, 1
      %s221 = scalar_select %p220, %s16, 1
      %s222 = smul.addr %s221, 8
      %s223 = smul.addr %s222, 4
      %s224 = scalar_lea.vmem %s5, %s223
      %v225 = vld [vmem:[%s219] sm:$0xf]
      %v226 = vld [vmem:[%s219 + $0x4] sm:$0x1]
      %v227 = vld [vmem:[%s219 + $0x8] sm:$0xf]
      %v228 = vld [vmem:[%s219 + $0xc] sm:$0x1]
      %v229 = vld [vmem:[%s219 + $0x10] sm:$0xf]
      %v230 = vld [vmem:[%s219 + $0x14] sm:$0x1]
      %v231 = vld [vmem:[%s219 + $0x18] sm:$0xf]
      %v232 = vld [vmem:[%s219 + $0x1c] sm:$0x1]
      %v233 = vld [vmem:[%s219 + $0x20] sm:$0xf]
      %v234 = vld [vmem:[%s219 + $0x24] sm:$0x1]
      %v235 = vld [vmem:[%s219 + $0x28] sm:$0xf]
      %v236 = vld [vmem:[%s219 + $0x2c] sm:$0x1]
      %v237 = vld [vmem:[%s219 + $0x30] sm:$0xf]
      %v238 = vld [vmem:[%s219 + $0x34] sm:$0x1]
      %v239 = vld [vmem:[%s219 + $0x38] sm:$0xf]
      %v240 = vld [vmem:[%s219 + $0x3c] sm:$0x1]
      %v241 = vld [vmem:[%s219 + $0x40] sm:$0xf]
      %v242 = vld [vmem:[%s219 + $0x44] sm:$0x1]
      %v243 = vld [vmem:[%s219 + $0x48] sm:$0xf]
      %v244 = vld [vmem:[%s219 + $0x4c] sm:$0x1]
      %v245 = vunpack.c.l.bf16 %v225
      %v246 = vunpack.c.l.bf16 %v226
      %v247 = vunpack.c.l.bf16 %v227
      %v248 = vunpack.c.l.bf16 %v228
      %v249 = vunpack.c.l.bf16 %v229
      %v250 = vunpack.c.l.bf16 %v230
      %v251 = vunpack.c.l.bf16 %v231
      %v252 = vunpack.c.l.bf16 %v232
      %v253 = vunpack.c.l.bf16 %v233
      %v254 = vunpack.c.l.bf16 %v234
      %v255 = vunpack.c.l.bf16 %v235
      %v256 = vunpack.c.l.bf16 %v236
      %v257 = vunpack.c.l.bf16 %v237
      %v258 = vunpack.c.l.bf16 %v238
      %v259 = vunpack.c.l.bf16 %v239
      %v260 = vunpack.c.l.bf16 %v240
      %v261 = vunpack.c.l.bf16 %v241
      %v262 = vunpack.c.l.bf16 %v242
      %v263 = vunpack.c.l.bf16 %v243
      %v264 = vunpack.c.l.bf16 %v244
      %v265 = vmax.f32 %v245, 0.0
      %v266 = vmax.f32 %v247, 0.0
      %v267 = vmax.f32 %v249, 0.0
      %v268 = vmax.f32 %v251, 0.0
      %v269 = vmax.f32 %v253, 0.0
      %v270 = vmax.f32 %v255, 0.0
      %v271 = vmax.f32 %v257, 0.0
      %v272 = vmax.f32 %v259, 0.0
      %v273 = vld [vmem:[%s1] sm:$0x1]
      %v275 = vperm.slane %v273, 0
      %v277 = vmul.f32 %v265, %v275
      %v278 = vmul.f32 %v266, %v275
      %v279 = vmul.f32 %v267, %v275
      %v280 = vmul.f32 %v268, %v275
      %v281 = vmul.f32 %v269, %v275
      %v282 = vmul.f32 %v270, %v275
      %v283 = vmul.f32 %v271, %v275
      %v284 = vmul.f32 %v272, %v275
      %v285 = vadd.f32 %v277, 0.0
      %v286 = vadd.f32 %v278, 0.0
      %v287 = vadd.f32 %v279, 0.0
      %v288 = vadd.f32 %v280, 0.0
      %v289 = vadd.f32 %v281, 0.0
      %v290 = vadd.f32 %v282, 0.0
      %v291 = vadd.f32 %v283, 0.0
      %v292 = vadd.f32 %v284, 0.0
      %v293 = vmax.f32 %v245, -1e+30
      %v294 = vmax.f32 %v247, -1e+30
      %v295 = vmax.f32 %v249, -1e+30
      %v296 = vmax.f32 %v251, -1e+30
      %v297 = vmax.f32 %v253, -1e+30
      %v298 = vmax.f32 %v255, -1e+30
      %v299 = vmax.f32 %v257, -1e+30
      %v300 = vmax.f32 %v259, -1e+30
      %v301 = vmax.f32 %v246, 0.0
      %v302 = vmax.f32 %v248, 0.0
      %v303 = vmax.f32 %v250, 0.0
      %v304 = vmax.f32 %v252, 0.0
      %v305 = vmax.f32 %v254, 0.0
      %v306 = vmax.f32 %v256, 0.0
      %v307 = vmax.f32 %v258, 0.0
      %v308 = vmax.f32 %v260, 0.0
      %s309 = scalar_lea.vmem %s1, 1
      %v310 = vld [vmem:[%s309] sm:$0x1]
      %v312 = vperm.slane %v310, 0
      %v314 = vmul.f32 %v265, %v312
      %v315 = vmul.f32 %v301, %v312
      %v316 = vmul.f32 %v266, %v312
      %v317 = vmul.f32 %v302, %v312
      %v318 = vmul.f32 %v267, %v312
      %v319 = vmul.f32 %v303, %v312
      %v320 = vmul.f32 %v268, %v312
      %v321 = vmul.f32 %v304, %v312
      %v322 = vmul.f32 %v269, %v312
      %v323 = vmul.f32 %v305, %v312
      %v324 = vmul.f32 %v270, %v312
      %v325 = vmul.f32 %v306, %v312
      %v326 = vmul.f32 %v271, %v312
      %v327 = vmul.f32 %v307, %v312
      %v328 = vmul.f32 %v272, %v312
      %v329 = vmul.f32 %v308, %v312
      %vm346 = vcmask 1046528
      %v347 = vrot.slane %v314, 1
      %v348 = vrot.slane %v315, 1
      %v349 = vsel %vm346, %v347, %v348
      %v350 = vrot.slane %v316, 1
      %v351 = vrot.slane %v317, 1
      %v352 = vsel %vm346, %v350, %v351
      %v353 = vrot.slane %v318, 1
      %v354 = vrot.slane %v319, 1
      %v355 = vsel %vm346, %v353, %v354
      %v356 = vrot.slane %v320, 1
      %v357 = vrot.slane %v321, 1
      %v358 = vsel %vm346, %v356, %v357
      %v359 = vrot.slane %v322, 1
      %v360 = vrot.slane %v323, 1
      %v361 = vsel %vm346, %v359, %v360
      %v362 = vrot.slane %v324, 1
      %v363 = vrot.slane %v325, 1
      %v364 = vsel %vm346, %v362, %v363
      %v365 = vrot.slane %v326, 1
      %v366 = vrot.slane %v327, 1
      %v367 = vsel %vm346, %v365, %v366
      %v368 = vrot.slane %v328, 1
      %v369 = vrot.slane %v329, 1
      %v370 = vsel %vm346, %v368, %v369
      %v379 = vadd.f32 %v285, %v349
      %v380 = vadd.f32 %v286, %v352
      %v381 = vadd.f32 %v287, %v355
      %v382 = vadd.f32 %v288, %v358
      %v383 = vadd.f32 %v289, %v361
      %v384 = vadd.f32 %v290, %v364
      %v385 = vadd.f32 %v291, %v367
      %v386 = vadd.f32 %v292, %v370
      %v403 = vrot.slane %v245, 1
      %v404 = vrot.slane %v246, 1
      %v405 = vsel %vm346, %v403, %v404
      %v406 = vrot.slane %v247, 1
      %v407 = vrot.slane %v248, 1
      %v408 = vsel %vm346, %v406, %v407
      %v409 = vrot.slane %v249, 1
      %v410 = vrot.slane %v250, 1
      %v411 = vsel %vm346, %v409, %v410
      %v412 = vrot.slane %v251, 1
      %v413 = vrot.slane %v252, 1
      %v414 = vsel %vm346, %v412, %v413
      %v415 = vrot.slane %v253, 1
      %v416 = vrot.slane %v254, 1
      %v417 = vsel %vm346, %v415, %v416
      %v418 = vrot.slane %v255, 1
      %v419 = vrot.slane %v256, 1
      %v420 = vsel %vm346, %v418, %v419
      %v421 = vrot.slane %v257, 1
      %v422 = vrot.slane %v258, 1
      %v423 = vsel %vm346, %v421, %v422
      %v424 = vrot.slane %v259, 1
      %v425 = vrot.slane %v260, 1
      %v426 = vsel %vm346, %v424, %v425
      %v435 = vmax.f32 %v293, %v405
      %v436 = vmax.f32 %v294, %v408
      %v437 = vmax.f32 %v295, %v411
      %v438 = vmax.f32 %v296, %v414
      %v439 = vmax.f32 %v297, %v417
      %v440 = vmax.f32 %v298, %v420
      %v441 = vmax.f32 %v299, %v423
      %v442 = vmax.f32 %v300, %v426
      %s443 = scalar_lea.vmem %s1, 2
      %v444 = vld [vmem:[%s443] sm:$0x1]
      %v446 = vperm.slane %v444, 0
      %v448 = vmul.f32 %v265, %v446
      %v449 = vmul.f32 %v301, %v446
      %v450 = vmul.f32 %v266, %v446
      %v451 = vmul.f32 %v302, %v446
      %v452 = vmul.f32 %v267, %v446
      %v453 = vmul.f32 %v303, %v446
      %v454 = vmul.f32 %v268, %v446
      %v455 = vmul.f32 %v304, %v446
      %v456 = vmul.f32 %v269, %v446
      %v457 = vmul.f32 %v305, %v446
      %v458 = vmul.f32 %v270, %v446
      %v459 = vmul.f32 %v306, %v446
      %v460 = vmul.f32 %v271, %v446
      %v461 = vmul.f32 %v307, %v446
      %v462 = vmul.f32 %v272, %v446
      %v463 = vmul.f32 %v308, %v446
      %vm480 = vcmask 1045504
      %v481 = vrot.slane %v448, 2
      %v482 = vrot.slane %v449, 2
      %v483 = vsel %vm480, %v481, %v482
      %v484 = vrot.slane %v450, 2
      %v485 = vrot.slane %v451, 2
      %v486 = vsel %vm480, %v484, %v485
      %v487 = vrot.slane %v452, 2
      %v488 = vrot.slane %v453, 2
      %v489 = vsel %vm480, %v487, %v488
      %v490 = vrot.slane %v454, 2
      %v491 = vrot.slane %v455, 2
      %v492 = vsel %vm480, %v490, %v491
      %v493 = vrot.slane %v456, 2
      %v494 = vrot.slane %v457, 2
      %v495 = vsel %vm480, %v493, %v494
      %v496 = vrot.slane %v458, 2
      %v497 = vrot.slane %v459, 2
      %v498 = vsel %vm480, %v496, %v497
      %v499 = vrot.slane %v460, 2
      %v500 = vrot.slane %v461, 2
      %v501 = vsel %vm480, %v499, %v500
      %v502 = vrot.slane %v462, 2
      %v503 = vrot.slane %v463, 2
      %v504 = vsel %vm480, %v502, %v503
      %v513 = vadd.f32 %v379, %v483
      %v514 = vadd.f32 %v380, %v486
      %v515 = vadd.f32 %v381, %v489
      %v516 = vadd.f32 %v382, %v492
      %v517 = vadd.f32 %v383, %v495
      %v518 = vadd.f32 %v384, %v498
      %v519 = vadd.f32 %v385, %v501
      %v520 = vadd.f32 %v386, %v504
      %v521 = vrot.slane %v245, 2
      %v522 = vrot.slane %v246, 2
      %v523 = vsel %vm480, %v521, %v522
      %v524 = vrot.slane %v247, 2
      %v525 = vrot.slane %v248, 2
      %v526 = vsel %vm480, %v524, %v525
      %v527 = vrot.slane %v249, 2
      %v528 = vrot.slane %v250, 2
      %v529 = vsel %vm480, %v527, %v528
      %v530 = vrot.slane %v251, 2
      %v531 = vrot.slane %v252, 2
      %v532 = vsel %vm480, %v530, %v531
      %v533 = vrot.slane %v253, 2
      %v534 = vrot.slane %v254, 2
      %v535 = vsel %vm480, %v533, %v534
      %v536 = vrot.slane %v255, 2
      %v537 = vrot.slane %v256, 2
      %v538 = vsel %vm480, %v536, %v537
      %v539 = vrot.slane %v257, 2
      %v540 = vrot.slane %v258, 2
      %v541 = vsel %vm480, %v539, %v540
      %v542 = vrot.slane %v259, 2
      %v543 = vrot.slane %v260, 2
      %v544 = vsel %vm480, %v542, %v543
      %v553 = vmax.f32 %v435, %v523
      %v554 = vmax.f32 %v436, %v526
      %v555 = vmax.f32 %v437, %v529
      %v556 = vmax.f32 %v438, %v532
      %v557 = vmax.f32 %v439, %v535
      %v558 = vmax.f32 %v440, %v538
      %v559 = vmax.f32 %v441, %v541
      %v560 = vmax.f32 %v442, %v544
      %v561 = vmax.f32 %v261, 0.0
      %s562 = scalar_lea.vmem %s1, 3
      %v563 = vld [vmem:[%s562] sm:$0x1]
      %v565 = vperm.slane %v563, 0
      %v567 = vmul.f32 %v266, %v565
      %v568 = vmul.f32 %v267, %v565
      %v569 = vmul.f32 %v268, %v565
      %v570 = vmul.f32 %v269, %v565
      %v571 = vmul.f32 %v270, %v565
      %v572 = vmul.f32 %v271, %v565
      %v573 = vmul.f32 %v272, %v565
      %v574 = vmul.f32 %v561, %v565
      %v575 = vadd.f32 %v513, %v567
      %v576 = vadd.f32 %v514, %v568
      %v577 = vadd.f32 %v515, %v569
      %v578 = vadd.f32 %v516, %v570
      %v579 = vadd.f32 %v517, %v571
      %v580 = vadd.f32 %v518, %v572
      %v581 = vadd.f32 %v519, %v573
      %v582 = vadd.f32 %v520, %v574
      %v583 = vmax.f32 %v553, %v247
      %v584 = vmax.f32 %v554, %v249
      %v585 = vmax.f32 %v555, %v251
      %v586 = vmax.f32 %v556, %v253
      %v587 = vmax.f32 %v557, %v255
      %v588 = vmax.f32 %v558, %v257
      %v589 = vmax.f32 %v559, %v259
      %v590 = vmax.f32 %v560, %v261
      %v591 = vmax.f32 %v262, 0.0
      %s592 = scalar_lea.vmem %s1, 4
      %v593 = vld [vmem:[%s592] sm:$0x1]
      %v595 = vperm.slane %v593, 0
      %v597 = vmul.f32 %v266, %v595
      %v598 = vmul.f32 %v302, %v595
      %v599 = vmul.f32 %v267, %v595
      %v600 = vmul.f32 %v303, %v595
      %v601 = vmul.f32 %v268, %v595
      %v602 = vmul.f32 %v304, %v595
      %v603 = vmul.f32 %v269, %v595
      %v604 = vmul.f32 %v305, %v595
      %v605 = vmul.f32 %v270, %v595
      %v606 = vmul.f32 %v306, %v595
      %v607 = vmul.f32 %v271, %v595
      %v608 = vmul.f32 %v307, %v595
      %v609 = vmul.f32 %v272, %v595
      %v610 = vmul.f32 %v308, %v595
      %v611 = vmul.f32 %v561, %v595
      %v612 = vmul.f32 %v591, %v595
      %v629 = vrot.slane %v597, 1
      %v630 = vrot.slane %v598, 1
      %v631 = vsel %vm346, %v629, %v630
      %v632 = vrot.slane %v599, 1
      %v633 = vrot.slane %v600, 1
      %v634 = vsel %vm346, %v632, %v633
      %v635 = vrot.slane %v601, 1
      %v636 = vrot.slane %v602, 1
      %v637 = vsel %vm346, %v635, %v636
      %v638 = vrot.slane %v603, 1
      %v639 = vrot.slane %v604, 1
      %v640 = vsel %vm346, %v638, %v639
      %v641 = vrot.slane %v605, 1
      %v642 = vrot.slane %v606, 1
      %v643 = vsel %vm346, %v641, %v642
      %v644 = vrot.slane %v607, 1
      %v645 = vrot.slane %v608, 1
      %v646 = vsel %vm346, %v644, %v645
      %v647 = vrot.slane %v609, 1
      %v648 = vrot.slane %v610, 1
      %v649 = vsel %vm346, %v647, %v648
      %v650 = vrot.slane %v611, 1
      %v651 = vrot.slane %v612, 1
      %v652 = vsel %vm346, %v650, %v651
      %v661 = vadd.f32 %v575, %v631
      %v662 = vadd.f32 %v576, %v634
      %v663 = vadd.f32 %v577, %v637
      %v664 = vadd.f32 %v578, %v640
      %v665 = vadd.f32 %v579, %v643
      %v666 = vadd.f32 %v580, %v646
      %v667 = vadd.f32 %v581, %v649
      %v668 = vadd.f32 %v582, %v652
      %v671 = vrot.slane %v261, 1
      %v672 = vrot.slane %v262, 1
      %v673 = vsel %vm346, %v671, %v672
      %v675 = vmax.f32 %v583, %v408
      %v676 = vmax.f32 %v584, %v411
      %v677 = vmax.f32 %v585, %v414
      %v678 = vmax.f32 %v586, %v417
      %v679 = vmax.f32 %v587, %v420
      %v680 = vmax.f32 %v588, %v423
      %v681 = vmax.f32 %v589, %v426
      %v682 = vmax.f32 %v590, %v673
      %s683 = scalar_lea.vmem %s1, 5
      %v684 = vld [vmem:[%s683] sm:$0x1]
      %v686 = vperm.slane %v684, 0
      %v688 = vmul.f32 %v266, %v686
      %v689 = vmul.f32 %v302, %v686
      %v690 = vmul.f32 %v267, %v686
      %v691 = vmul.f32 %v303, %v686
      %v692 = vmul.f32 %v268, %v686
      %v693 = vmul.f32 %v304, %v686
      %v694 = vmul.f32 %v269, %v686
      %v695 = vmul.f32 %v305, %v686
      %v696 = vmul.f32 %v270, %v686
      %v697 = vmul.f32 %v306, %v686
      %v698 = vmul.f32 %v271, %v686
      %v699 = vmul.f32 %v307, %v686
      %v700 = vmul.f32 %v272, %v686
      %v701 = vmul.f32 %v308, %v686
      %v702 = vmul.f32 %v561, %v686
      %v703 = vmul.f32 %v591, %v686
      %v720 = vrot.slane %v688, 2
      %v721 = vrot.slane %v689, 2
      %v722 = vsel %vm480, %v720, %v721
      %v723 = vrot.slane %v690, 2
      %v724 = vrot.slane %v691, 2
      %v725 = vsel %vm480, %v723, %v724
      %v726 = vrot.slane %v692, 2
      %v727 = vrot.slane %v693, 2
      %v728 = vsel %vm480, %v726, %v727
      %v729 = vrot.slane %v694, 2
      %v730 = vrot.slane %v695, 2
      %v731 = vsel %vm480, %v729, %v730
      %v732 = vrot.slane %v696, 2
      %v733 = vrot.slane %v697, 2
      %v734 = vsel %vm480, %v732, %v733
      %v735 = vrot.slane %v698, 2
      %v736 = vrot.slane %v699, 2
      %v737 = vsel %vm480, %v735, %v736
      %v738 = vrot.slane %v700, 2
      %v739 = vrot.slane %v701, 2
      %v740 = vsel %vm480, %v738, %v739
      %v741 = vrot.slane %v702, 2
      %v742 = vrot.slane %v703, 2
      %v743 = vsel %vm480, %v741, %v742
      %v752 = vadd.f32 %v661, %v722
      %v753 = vadd.f32 %v662, %v725
      %v754 = vadd.f32 %v663, %v728
      %v755 = vadd.f32 %v664, %v731
      %v756 = vadd.f32 %v665, %v734
      %v757 = vadd.f32 %v666, %v737
      %v758 = vadd.f32 %v667, %v740
      %v759 = vadd.f32 %v668, %v743
      %v760 = vrot.slane %v261, 2
      %v761 = vrot.slane %v262, 2
      %v762 = vsel %vm480, %v760, %v761
      %v764 = vmax.f32 %v675, %v526
      %v765 = vmax.f32 %v676, %v529
      %v766 = vmax.f32 %v677, %v532
      %v767 = vmax.f32 %v678, %v535
      %v768 = vmax.f32 %v679, %v538
      %v769 = vmax.f32 %v680, %v541
      %v770 = vmax.f32 %v681, %v544
      %v771 = vmax.f32 %v682, %v762
      %v772 = vmax.f32 %v263, 0.0
      %s773 = scalar_lea.vmem %s1, 6
      %v774 = vld [vmem:[%s773] sm:$0x1]
      %v776 = vperm.slane %v774, 0
      %v778 = vmul.f32 %v267, %v776
      %v779 = vmul.f32 %v268, %v776
      %v780 = vmul.f32 %v269, %v776
      %v781 = vmul.f32 %v270, %v776
      %v782 = vmul.f32 %v271, %v776
      %v783 = vmul.f32 %v272, %v776
      %v784 = vmul.f32 %v561, %v776
      %v785 = vmul.f32 %v772, %v776
      %v786 = vadd.f32 %v752, %v778
      %v787 = vadd.f32 %v753, %v779
      %v788 = vadd.f32 %v754, %v780
      %v789 = vadd.f32 %v755, %v781
      %v790 = vadd.f32 %v756, %v782
      %v791 = vadd.f32 %v757, %v783
      %v792 = vadd.f32 %v758, %v784
      %v793 = vadd.f32 %v759, %v785
      %v794 = vmax.f32 %v764, %v249
      %v795 = vmax.f32 %v765, %v251
      %v796 = vmax.f32 %v766, %v253
      %v797 = vmax.f32 %v767, %v255
      %v798 = vmax.f32 %v768, %v257
      %v799 = vmax.f32 %v769, %v259
      %v800 = vmax.f32 %v770, %v261
      %v801 = vmax.f32 %v771, %v263
      %v802 = vmax.f32 %v264, 0.0
      %s803 = scalar_lea.vmem %s1, 7
      %v804 = vld [vmem:[%s803] sm:$0x1]
      %v806 = vperm.slane %v804, 0
      %v808 = vmul.f32 %v267, %v806
      %v809 = vmul.f32 %v303, %v806
      %v810 = vmul.f32 %v268, %v806
      %v811 = vmul.f32 %v304, %v806
      %v812 = vmul.f32 %v269, %v806
      %v813 = vmul.f32 %v305, %v806
      %v814 = vmul.f32 %v270, %v806
      %v815 = vmul.f32 %v306, %v806
      %v816 = vmul.f32 %v271, %v806
      %v817 = vmul.f32 %v307, %v806
      %v818 = vmul.f32 %v272, %v806
      %v819 = vmul.f32 %v308, %v806
      %v820 = vmul.f32 %v561, %v806
      %v821 = vmul.f32 %v591, %v806
      %v822 = vmul.f32 %v772, %v806
      %v823 = vmul.f32 %v802, %v806
      %v840 = vrot.slane %v808, 1
      %v841 = vrot.slane %v809, 1
      %v842 = vsel %vm346, %v840, %v841
      %v843 = vrot.slane %v810, 1
      %v844 = vrot.slane %v811, 1
      %v845 = vsel %vm346, %v843, %v844
      %v846 = vrot.slane %v812, 1
      %v847 = vrot.slane %v813, 1
      %v848 = vsel %vm346, %v846, %v847
      %v849 = vrot.slane %v814, 1
      %v850 = vrot.slane %v815, 1
      %v851 = vsel %vm346, %v849, %v850
      %v852 = vrot.slane %v816, 1
      %v853 = vrot.slane %v817, 1
      %v854 = vsel %vm346, %v852, %v853
      %v855 = vrot.slane %v818, 1
      %v856 = vrot.slane %v819, 1
      %v857 = vsel %vm346, %v855, %v856
      %v858 = vrot.slane %v820, 1
      %v859 = vrot.slane %v821, 1
      %v860 = vsel %vm346, %v858, %v859
      %v861 = vrot.slane %v822, 1
      %v862 = vrot.slane %v823, 1
      %v863 = vsel %vm346, %v861, %v862
      %v872 = vadd.f32 %v786, %v842
      %v873 = vadd.f32 %v787, %v845
      %v874 = vadd.f32 %v788, %v848
      %v875 = vadd.f32 %v789, %v851
      %v876 = vadd.f32 %v790, %v854
      %v877 = vadd.f32 %v791, %v857
      %v878 = vadd.f32 %v792, %v860
      %v879 = vadd.f32 %v793, %v863
      %v882 = vrot.slane %v263, 1
      %v883 = vrot.slane %v264, 1
      %v884 = vsel %vm346, %v882, %v883
      %v886 = vmax.f32 %v794, %v411
      %v887 = vmax.f32 %v795, %v414
      %v888 = vmax.f32 %v796, %v417
      %v889 = vmax.f32 %v797, %v420
      %v890 = vmax.f32 %v798, %v423
      %v891 = vmax.f32 %v799, %v426
      %v892 = vmax.f32 %v800, %v673
      %v893 = vmax.f32 %v801, %v884
      %s894 = scalar_lea.vmem %s1, 8
      %v895 = vld [vmem:[%s894] sm:$0x1]
      %v897 = vperm.slane %v895, 0
      %v899 = vmul.f32 %v267, %v897
      %v900 = vmul.f32 %v303, %v897
      %v901 = vmul.f32 %v268, %v897
      %v902 = vmul.f32 %v304, %v897
      %v903 = vmul.f32 %v269, %v897
      %v904 = vmul.f32 %v305, %v897
      %v905 = vmul.f32 %v270, %v897
      %v906 = vmul.f32 %v306, %v897
      %v907 = vmul.f32 %v271, %v897
      %v908 = vmul.f32 %v307, %v897
      %v909 = vmul.f32 %v272, %v897
      %v910 = vmul.f32 %v308, %v897
      %v911 = vmul.f32 %v561, %v897
      %v912 = vmul.f32 %v591, %v897
      %v913 = vmul.f32 %v772, %v897
      %v914 = vmul.f32 %v802, %v897
      %v931 = vrot.slane %v899, 2
      %v932 = vrot.slane %v900, 2
      %v933 = vsel %vm480, %v931, %v932
      %v934 = vrot.slane %v901, 2
      %v935 = vrot.slane %v902, 2
      %v936 = vsel %vm480, %v934, %v935
      %v937 = vrot.slane %v903, 2
      %v938 = vrot.slane %v904, 2
      %v939 = vsel %vm480, %v937, %v938
      %v940 = vrot.slane %v905, 2
      %v941 = vrot.slane %v906, 2
      %v942 = vsel %vm480, %v940, %v941
      %v943 = vrot.slane %v907, 2
      %v944 = vrot.slane %v908, 2
      %v945 = vsel %vm480, %v943, %v944
      %v946 = vrot.slane %v909, 2
      %v947 = vrot.slane %v910, 2
      %v948 = vsel %vm480, %v946, %v947
      %v949 = vrot.slane %v911, 2
      %v950 = vrot.slane %v912, 2
      %v951 = vsel %vm480, %v949, %v950
      %v952 = vrot.slane %v913, 2
      %v953 = vrot.slane %v914, 2
      %v954 = vsel %vm480, %v952, %v953
      %v963 = vadd.f32 %v872, %v933
      %v964 = vadd.f32 %v873, %v936
      %v965 = vadd.f32 %v874, %v939
      %v966 = vadd.f32 %v875, %v942
      %v967 = vadd.f32 %v876, %v945
      %v968 = vadd.f32 %v877, %v948
      %v969 = vadd.f32 %v878, %v951
      %v970 = vadd.f32 %v879, %v954
      %v971 = vrot.slane %v263, 2
      %v972 = vrot.slane %v264, 2
      %v973 = vsel %vm480, %v971, %v972
      %v975 = vmax.f32 %v886, %v529
      %v976 = vmax.f32 %v887, %v532
      %v977 = vmax.f32 %v888, %v535
      %v978 = vmax.f32 %v889, %v538
      %v979 = vmax.f32 %v890, %v541
      %v980 = vmax.f32 %v891, %v544
      %v981 = vmax.f32 %v892, %v762
      %v982 = vmax.f32 %v893, %v973
      %v983 = vpack.c.bf16 %v964, %v963
      %v984 = vpack.c.bf16 %v966, %v965
      %v985 = vpack.c.bf16 %v968, %v967
      %v986 = vpack.c.bf16 %v970, %v969
      %v987 = vpack.c.bf16 %v976, %v975
      %v988 = vpack.c.bf16 %v978, %v977
      %v989 = vpack.c.bf16 %v980, %v979
      %v990 = vpack.c.bf16 %v982, %v981
      %v991 = vld [vmem:[%s2] sm:$0xf]
      %v992 = vld [vmem:[%s2 + $0x4] sm:$0xf]
      %v993 = vld [vmem:[%s2 + $0x8] sm:$0xf]
      %v994 = vld [vmem:[%s2 + $0xc] sm:$0xf]
      %v995 = vld [vmem:[%s2 + $0x10] sm:$0xf]
      %v996 = vld [vmem:[%s2 + $0x14] sm:$0xf]
      %v997 = vld [vmem:[%s2 + $0x18] sm:$0xf]
      %v998 = vld [vmem:[%s2 + $0x1c] sm:$0xf]
      %v999 = vld [vmem:[%s2 + $0x20] sm:$0xf]
      %v1000 = vld [vmem:[%s2 + $0x24] sm:$0xf]
      %v1001 = vld [vmem:[%s2 + $0x28] sm:$0xf]
      %v1002 = vld [vmem:[%s2 + $0x2c] sm:$0xf]
      %v1003 = vld [vmem:[%s2 + $0x30] sm:$0xf]
      %v1004 = vld [vmem:[%s2 + $0x34] sm:$0xf]
      %v1005 = vld [vmem:[%s2 + $0x38] sm:$0xf]
      %v1006 = vld [vmem:[%s2 + $0x3c] sm:$0xf]
      %v1007 = vld [vmem:[%s3] sm:$0xf]
      %v1008 = vld [vmem:[%s3 + $0x4] sm:$0xf]
      %v1009 = vld [vmem:[%s3 + $0x8] sm:$0xf]
      %v1010 = vld [vmem:[%s3 + $0xc] sm:$0xf]
      %v1011 = vld [vmem:[%s3 + $0x10] sm:$0xf]
      %v1012 = vld [vmem:[%s3 + $0x14] sm:$0xf]
      %v1013 = vld [vmem:[%s3 + $0x18] sm:$0xf]
      %v1014 = vld [vmem:[%s3 + $0x1c] sm:$0xf]
      %v1015 = vld [vmem:[%s3 + $0x20] sm:$0xf]
      %v1016 = vld [vmem:[%s3 + $0x24] sm:$0xf]
      %v1017 = vld [vmem:[%s3 + $0x28] sm:$0xf]
      %v1018 = vld [vmem:[%s3 + $0x2c] sm:$0xf]
      %v1019 = vld [vmem:[%s3 + $0x30] sm:$0xf]
      %v1020 = vld [vmem:[%s3 + $0x34] sm:$0xf]
      %v1021 = vld [vmem:[%s3 + $0x38] sm:$0xf]
      %v1022 = vld [vmem:[%s3 + $0x3c] sm:$0xf]
      %v1039 = vunpack.c.l.b16 %v1007
      %v1040 = vunpack.c.l.b16 %v1008
      %v1041 = vunpack.c.l.b16 %v1009
      %v1042 = vunpack.c.l.b16 %v1010
      %v1043 = vunpack.c.l.b16 %v1011
      %v1044 = vunpack.c.l.b16 %v1012
      %v1045 = vunpack.c.l.b16 %v1013
      %v1046 = vunpack.c.l.b16 %v1014
      %v1047 = vunpack.c.l.b16 %v1015
      %v1048 = vunpack.c.l.b16 %v1016
      %v1049 = vunpack.c.l.b16 %v1017
      %v1050 = vunpack.c.l.b16 %v1018
      %v1051 = vunpack.c.l.b16 %v1019
      %v1052 = vunpack.c.l.b16 %v1020
      %v1053 = vunpack.c.l.b16 %v1021
      %v1054 = vunpack.c.l.b16 %v1022
      %v1055 = vpack.c.b16 %v1040, %v1039
      %v1056 = vpack.c.b16 %v1042, %v1041
      %v1057 = vpack.c.b16 %v1044, %v1043
      %v1058 = vpack.c.b16 %v1046, %v1045
      %v1059 = vpack.c.b16 %v1048, %v1047
      %v1060 = vpack.c.b16 %v1050, %v1049
      %v1061 = vpack.c.b16 %v1052, %v1051
      %v1062 = vpack.c.b16 %v1054, %v1053
      %1071 = vmatpush.bf16.msra.mxu0 %v1062
      %1072 = vmatpush.bf16.msra.mxu0 %v1061
      %1073 = vmatpush.bf16.msra.mxu0 %v1060
      %1074 = vmatpush.bf16.msra.mxu0 %v1059
      %1075 = vmatpush.bf16.msra.mxu0 %v1058
      %1076 = vmatpush.bf16.msra.mxu0 %v1057
      %1077 = vmatpush.bf16.msra.mxu0 %v1056
      %1078 = vmatpush.bf16.msra.mxu0 %v1055
      %1079 = vmatmul.bf16.gmra.mxu0 %v987
      %v1080 = vpop.f32.mrf.mxu0
      %v1081 = vadd.f32 0.0, %v1080
      %v1082 = vpop.f32.mrf.mxu0
      %v1083 = vadd.f32 0.0, %v1082
      %1084 = vmatmul.bf16.gmra.mxu0 %v988
      %v1085 = vpop.f32.mrf.mxu0
      %v1086 = vadd.f32 0.0, %v1085
      %v1087 = vpop.f32.mrf.mxu0
      %v1088 = vadd.f32 0.0, %v1087
      %1089 = vmatmul.bf16.gmra.mxu0 %v989
      %v1090 = vpop.f32.mrf.mxu0
      %v1091 = vadd.f32 0.0, %v1090
      %v1092 = vpop.f32.mrf.mxu0
      %v1093 = vadd.f32 0.0, %v1092
      %1094 = vmatmul.bf16.gmra.mxu0 %v990
      %v1095 = vpop.f32.mrf.mxu0
      %v1096 = vadd.f32 0.0, %v1095
      %v1097 = vpop.f32.mrf.mxu0
      %v1098 = vadd.f32 0.0, %v1097
      %1099 = vdwg.mxu0
      %v1116 = vunpack.c.l.b16 %v991
      %v1117 = vunpack.c.l.b16 %v992
      %v1118 = vunpack.c.l.b16 %v993
      %v1119 = vunpack.c.l.b16 %v994
      %v1120 = vunpack.c.l.b16 %v995
      %v1121 = vunpack.c.l.b16 %v996
      %v1122 = vunpack.c.l.b16 %v997
      %v1123 = vunpack.c.l.b16 %v998
      %v1124 = vunpack.c.l.b16 %v999
      %v1125 = vunpack.c.l.b16 %v1000
      %v1126 = vunpack.c.l.b16 %v1001
      %v1127 = vunpack.c.l.b16 %v1002
      %v1128 = vunpack.c.l.b16 %v1003
      %v1129 = vunpack.c.l.b16 %v1004
      %v1130 = vunpack.c.l.b16 %v1005
      %v1131 = vunpack.c.l.b16 %v1006
      %v1132 = vpack.c.b16 %v1117, %v1116
      %v1133 = vpack.c.b16 %v1119, %v1118
      %v1134 = vpack.c.b16 %v1121, %v1120
      %v1135 = vpack.c.b16 %v1123, %v1122
      %v1136 = vpack.c.b16 %v1125, %v1124
      %v1137 = vpack.c.b16 %v1127, %v1126
      %v1138 = vpack.c.b16 %v1129, %v1128
      %v1139 = vpack.c.b16 %v1131, %v1130
      %1148 = vmatpush.bf16.msra.mxu0 %v1139
      %1149 = vmatpush.bf16.msra.mxu0 %v1138
      %1150 = vmatpush.bf16.msra.mxu0 %v1137
      %1151 = vmatpush.bf16.msra.mxu0 %v1136
      %1152 = vmatpush.bf16.msra.mxu0 %v1135
      %1153 = vmatpush.bf16.msra.mxu0 %v1134
      %1154 = vmatpush.bf16.msra.mxu0 %v1133
      %1155 = vmatpush.bf16.msra.mxu0 %v1132
      %1156 = vmatmul.bf16.gmra.mxu0 %v983
      %v1157 = vpop.f32.mrf.mxu0
      %v1158 = vadd.f32 %v1081, %v1157
      %v1159 = vpop.f32.mrf.mxu0
      %v1160 = vadd.f32 %v1083, %v1159
      %1161 = vmatmul.bf16.gmra.mxu0 %v984
      %v1162 = vpop.f32.mrf.mxu0
      %v1163 = vadd.f32 %v1086, %v1162
      %v1164 = vpop.f32.mrf.mxu0
      %v1165 = vadd.f32 %v1088, %v1164
      %1166 = vmatmul.bf16.gmra.mxu0 %v985
      %v1167 = vpop.f32.mrf.mxu0
      %v1168 = vadd.f32 %v1091, %v1167
      %v1169 = vpop.f32.mrf.mxu0
      %v1170 = vadd.f32 %v1093, %v1169
      %1171 = vmatmul.bf16.gmra.mxu0 %v986
      %v1172 = vpop.f32.mrf.mxu0
      %v1173 = vadd.f32 %v1096, %v1172
      %v1174 = vpop.f32.mrf.mxu0
      %v1175 = vadd.f32 %v1098, %v1174
      %1176 = vdwg.mxu0
      %v1177 = vld [vmem:[%s4] sm:$0x1]
      %v1179 = vperm.slane %v1177, 0
      %v1181 = vadd.f32 %v1158, %v1179
      %v1182 = vadd.f32 %v1160, %v1179
      %v1183 = vadd.f32 %v1163, %v1179
      %v1184 = vadd.f32 %v1165, %v1179
      %v1185 = vadd.f32 %v1168, %v1179
      %v1186 = vadd.f32 %v1170, %v1179
      %v1187 = vadd.f32 %v1173, %v1179
      %v1188 = vadd.f32 %v1175, %v1179
      %v1189 = vmax.f32 %v1181, 0.0
      %v1190 = vmax.f32 %v1182, 0.0
      %v1191 = vmax.f32 %v1183, 0.0
      %v1192 = vmax.f32 %v1184, 0.0
      %v1193 = vmax.f32 %v1185, 0.0
      %v1194 = vmax.f32 %v1186, 0.0
      %v1195 = vmax.f32 %v1187, 0.0
      %v1196 = vmax.f32 %v1188, 0.0
      %v1197 = vpack.c.bf16 %v1189, %v1189
      %v1198 = vpack.c.bf16 %v1190, %v1190
      %v1199 = vpack.c.bf16 %v1191, %v1191
      %v1200 = vpack.c.bf16 %v1192, %v1192
      %v1201 = vpack.c.bf16 %v1193, %v1193
      %v1202 = vpack.c.bf16 %v1194, %v1194
      %v1203 = vpack.c.bf16 %v1195, %v1195
      %v1204 = vpack.c.bf16 %v1196, %v1196
      %1205 = vst [vmem:[%s224] sm:$0xf] %v1197
      %1206 = vst [vmem:[%s224 + $0x4] sm:$0xf] %v1198
      %1207 = vst [vmem:[%s224 + $0x8] sm:$0xf] %v1199
      %1208 = vst [vmem:[%s224 + $0xc] sm:$0xf] %v1200
      %1209 = vst [vmem:[%s224 + $0x10] sm:$0xf] %v1201
      %1210 = vst [vmem:[%s224 + $0x14] sm:$0xf] %v1202
      %1211 = vst [vmem:[%s224 + $0x18] sm:$0xf] %v1203
      %1212 = vst [vmem:[%s224 + $0x1c] sm:$0xf] %v1204
      %p1213 = scmp.lt.s32.totalorder %s16, 1
      %s1214 = scalar_select %p1213, %s16, 1
      %s1215 = smul.addr %s1214, 8
      %s1216 = smul.addr %s1215, 4
      %s1217 = scalar_lea.vmem %s5, %s1216
      // Predicated region
      $region41: #{pnasnet_forward.6} parent=39 // pred_check
        %p1218 = pneg %p144
      $region42: #{pnasnet_forward.6} parent=39 // pred_check_branch
        %1220 = sbr.rel (%p1218) target = $region44
      $region43: #{pnasnet_forward.6} parent=39 // pred_region
        _
      $region44: #{pnasnet_forward.6} parent=39 // pred_fallthru
        _
    $region40: #{pnasnet_forward.6} parent=5 // pred_fallthru
      _
    %p1221 = scmp.le.s32.totalorder 2, %s11
    // Predicated region
    $region45: #{pnasnet_forward.6} parent=5 // pred_check
      %p1222 = pneg %p1221
    $region46: #{pnasnet_forward.6} parent=5 // pred_check_branch
      %1224 = sbr.rel (%p1222) target = $region48
    $region47: #{pnasnet_forward.6} parent=5 // pred_region
      %s1225 = ssub.s32 %s11, 2
      // Predicated region
      $region49: #{pnasnet_forward.6} parent=47 // pred_check
        %p1226 = pneg %p150
      $region50: #{pnasnet_forward.6} parent=47 // pred_check_branch
        %1228 = sbr.rel (%p1226) target = $region52
      $region51: #{pnasnet_forward.6} parent=47 // pred_region
        %p1229 = scmp.lt.s32.totalorder %s17, 1
        %s1230 = scalar_select %p1229, %s17, 1
        %s1231 = smul.addr %s1230, 8
        %s1232 = smul.addr %s1231, 4
        %s1233 = scalar_lea.vmem %s5, %s1232
      $region52: #{pnasnet_forward.6} parent=47 // pred_fallthru
        _
    $region48: #{pnasnet_forward.6} parent=5 // pred_fallthru
      _
  $region6: #{pnasnet_forward.6} parent=0 // loop_footer
    %s15 = sadd.s32 1, %s11
  $region7: #{pnasnet_forward.6} parent=0 // loop_footer_branch
    %10 = sbr.rel target = $region3
  $region8: #{pnasnet_forward.6} parent=0 // loop_exit
    _

// kernel: pnasnet_forward.9
$region0: #{pnasnet_forward.9}
  #allocation0 [shape = 'u32[]', space=smem, size = 0x4, offset = 0x4, fixed_abs, tag = 'smem constant byte address 0x4 - core index']
  #allocation1 [shape = 'u32[72,128]{1,0:T(1,128)}', space=vmem, size = 0x9000, scoped, tag = 'internal scratch']
  #allocation2 [shape = 'f32[16,128]{1,0:T(8,128)}', space=vmem, size = 0x2000, scoped, tag = 'scratch operand']
  %s0 = inlined_call_operand.vmem [shape: bf16[16,128], index: 0, kind: input, shape index: {}]
  %s1 = inlined_call_operand.vmem [shape: bf16[128,128], index: 1, kind: input, shape index: {}]
  %s2 = inlined_call_operand.vmem [shape: f32[1,128], index: 2, kind: input, shape index: {}]
  %s3 = inlined_call_operand.vmem [shape: f32[16,128], index: 3, kind: output, shape index: {}]
  %s4 = sld [smem:[#allocation0]]
  $region30: #{pnasnet_forward.9} parent=0
    _
  %s6 = ssub.s32 1, %s4
  %s7 = scalar_select 0, %s6, %s4
  // Predicated region
  $region2: #{pnasnet_forward.9} parent=0 // pred_check
    _
  $region3: #{pnasnet_forward.9} parent=0 // pred_check_branch
    %9 = sbr.rel (0) target = $region5
  $region4: #{pnasnet_forward.9} parent=0 // pred_region
    _
  $region5: #{pnasnet_forward.9} parent=0 // pred_fallthru
    _
  // Predicated region
  $region6: #{pnasnet_forward.9} parent=0 // pred_check
    _
  $region7: #{pnasnet_forward.9} parent=0 // pred_check_branch
    %11 = sbr.rel (0) target = $region9
  $region8: #{pnasnet_forward.9} parent=0 // pred_region
    _
  $region9: #{pnasnet_forward.9} parent=0 // pred_fallthru
    _
  // Predicated region
  $region10: #{pnasnet_forward.9} parent=0 // pred_check
    _
  $region11: #{pnasnet_forward.9} parent=0 // pred_check_branch
    %13 = sbr.rel (0) target = $region13
  $region12: #{pnasnet_forward.9} parent=0 // pred_region
    _
  $region13: #{pnasnet_forward.9} parent=0 // pred_fallthru
    _
  %p14 = scmp.eq.s32.totalorder 0, 0
  // Predicated region
  $region14: #{pnasnet_forward.9} parent=0 // pred_check
    %p15 = pneg %p14
  $region15: #{pnasnet_forward.9} parent=0 // pred_check_branch
    %17 = sbr.rel (%p15) target = $region17
  $region16: #{pnasnet_forward.9} parent=0 // pred_region
    %18 = vst [vmem:[#allocation2] sm:$0xff] 0.0
    %19 = vst [vmem:[#allocation2 + $0x8] sm:$0xff] 0.0
  $region17: #{pnasnet_forward.9} parent=0 // pred_fallthru
    _
  %v20 = vld [vmem:[#allocation2] sm:$0xff]
  %v21 = vld [vmem:[#allocation2 + $0x8] sm:$0xff]
  %v22 = vld [vmem:[%s0] sm:$0xf]
  %v23 = vld [vmem:[%s0 + $0x4] sm:$0xf]
  %v24 = vld [vmem:[%s1] sm:$0xf]
  %v25 = vld [vmem:[%s1 + $0x4] sm:$0xf]
  %v26 = vld [vmem:[%s1 + $0x8] sm:$0xf]
  %v27 = vld [vmem:[%s1 + $0xc] sm:$0xf]
  %v28 = vld [vmem:[%s1 + $0x10] sm:$0xf]
  %v29 = vld [vmem:[%s1 + $0x14] sm:$0xf]
  %v30 = vld [vmem:[%s1 + $0x18] sm:$0xf]
  %v31 = vld [vmem:[%s1 + $0x1c] sm:$0xf]
  %v32 = vld [vmem:[%s1 + $0x20] sm:$0xf]
  %v33 = vld [vmem:[%s1 + $0x24] sm:$0xf]
  %v34 = vld [vmem:[%s1 + $0x28] sm:$0xf]
  %v35 = vld [vmem:[%s1 + $0x2c] sm:$0xf]
  %v36 = vld [vmem:[%s1 + $0x30] sm:$0xf]
  %v37 = vld [vmem:[%s1 + $0x34] sm:$0xf]
  %v38 = vld [vmem:[%s1 + $0x38] sm:$0xf]
  %v39 = vld [vmem:[%s1 + $0x3c] sm:$0xf]
  %v42 = vunpack.c.l.b16 %v22
  %v43 = vunpack.c.l.b16 %v23
  %v44 = vpack.c.b16 %v43, %v42
  %v62 = vunpack.c.l.b16 %v24
  %v63 = vunpack.c.l.b16 %v25
  %v64 = vunpack.c.l.b16 %v26
  %v65 = vunpack.c.l.b16 %v27
  %v66 = vunpack.c.l.b16 %v28
  %v67 = vunpack.c.l.b16 %v29
  %v68 = vunpack.c.l.b16 %v30
  %v69 = vunpack.c.l.b16 %v31
  %v70 = vunpack.c.l.b16 %v32
  %v71 = vunpack.c.l.b16 %v33
  %v72 = vunpack.c.l.b16 %v34
  %v73 = vunpack.c.l.b16 %v35
  %v74 = vunpack.c.l.b16 %v36
  %v75 = vunpack.c.l.b16 %v37
  %v76 = vunpack.c.l.b16 %v38
  %v77 = vunpack.c.l.b16 %v39
  %v78 = vpack.c.b16 %v63, %v62
  %v79 = vpack.c.b16 %v65, %v64
  %v80 = vpack.c.b16 %v67, %v66
  %v81 = vpack.c.b16 %v69, %v68
  %v82 = vpack.c.b16 %v71, %v70
  %v83 = vpack.c.b16 %v73, %v72
  %v84 = vpack.c.b16 %v75, %v74
  %v85 = vpack.c.b16 %v77, %v76
  %94 = vmatpush.bf16.msra.mxu0 %v85
  %95 = vmatpush.bf16.msra.mxu0 %v84
  %96 = vmatpush.bf16.msra.mxu0 %v83
  %97 = vmatpush.bf16.msra.mxu0 %v82
  %98 = vmatpush.bf16.msra.mxu0 %v81
  %99 = vmatpush.bf16.msra.mxu0 %v80
  %100 = vmatpush.bf16.msra.mxu0 %v79
  %101 = vmatpush.bf16.msra.mxu0 %v78
  %102 = vmatmul.bf16.gmra.mxu0 %v44
  %v103 = vpop.f32.mrf.mxu0
  %v104 = vadd.f32 0.0, %v103
  %v105 = vpop.f32.mrf.mxu0
  %v106 = vadd.f32 0.0, %v105
  %107 = vdwg.mxu0
  %v108 = vadd.f32 %v20, %v104
  %v109 = vadd.f32 %v21, %v106
  %110 = vst [vmem:[#allocation2] sm:$0xff] %v108
  %111 = vst [vmem:[#allocation2 + $0x8] sm:$0xff] %v109
  // Predicated region
  $region18: #{pnasnet_forward.9} parent=0 // pred_check
    %p112 = pneg %p14
  $region19: #{pnasnet_forward.9} parent=0 // pred_check_branch
    %114 = sbr.rel (%p112) target = $region21
  $region20: #{pnasnet_forward.9} parent=0 // pred_region
    %v115 = vld [vmem:[#allocation2] sm:$0xff]
    %v116 = vld [vmem:[#allocation2 + $0x8] sm:$0xff]
    %v117 = vld [vmem:[%s2] sm:$0x1]
    %v119 = vperm.slane %v117, 0
    %v121 = vadd.f32 %v115, %v119
    %v122 = vadd.f32 %v116, %v119
    %123 = vst [vmem:[%s3] sm:$0xff] %v121
    %124 = vst [vmem:[%s3 + $0x8] sm:$0xff] %v122
  $region21: #{pnasnet_forward.9} parent=0 // pred_fallthru
    _
  // Predicated region
  $region22: #{pnasnet_forward.9} parent=0 // pred_check
    _
  $region23: #{pnasnet_forward.9} parent=0 // pred_check_branch
    %126 = sbr.rel (0) target = $region25
  $region24: #{pnasnet_forward.9} parent=0 // pred_region
    _
  $region25: #{pnasnet_forward.9} parent=0 // pred_fallthru
    _
  // Predicated region
  $region26: #{pnasnet_forward.9} parent=0 // pred_check
    _
  $region27: #{pnasnet_forward.9} parent=0 // pred_check_branch
    %128 = sbr.rel (0) target = $region29
  $region28: #{pnasnet_forward.9} parent=0 // pred_region
    _
  $region29: #{pnasnet_forward.9} parent=0 // pred_fallthru
    _

</llo_original>
